<compile_context>
chip_gen: v5e
topology: v5e:2x2
jax: 0.10.0
libtpu: 0.0.40
codegen_flags: <defaults>
</compile_context>

<pallas_src>
import functools
import math

import jax
import jax.numpy as jnp
from jax.experimental import pallas as pl
from jax.experimental.pallas import tpu as pltpu


# ----------------------------- Fused kernel -----------------------------

def _layernorm(y, g, b, eps):
    mu = jnp.mean(y, axis=-1, keepdims=True)
    d = y - mu
    var = jnp.mean(d * d, axis=-1, keepdims=True)          # biased var, as in nn.LayerNorm
    return d * jax.lax.rsqrt(var + eps) * g + b


def _fused_encoder_kernel(
    x_ref,
    wqkv_ref, bqkv_ref, wo_ref, bo_ref,
    w1_ref, b1_ref, w2_ref, b2_ref,
    ln1g_ref, ln1b_ref, ln2g_ref, ln2b_ref,
    out_ref,
    ctx_ref,
    *, B, S, H, dh, eps,
):
    """One grid step == one encoder layer operating on the VMEM-resident slab."""
    D = H * dh
    scale = 1.0 / math.sqrt(dh)

    # Layer 0: seed the accumulator with (noise + positional encoding).
    @pl.when(pl.program_id(0) == 0)
    def _():
        out_ref[...] = x_ref[...]

    x = out_ref[...]                                         # (B*S, D), f32

    # ---- self-attention: packed QKV projection -------------------------------
    # weights are pre-transposed to (Din, Dout): columns [0:D]=q, [D:2D]=k, [2D:3D]=v
    qkv = jnp.dot(x, wqkv_ref[0], preferred_element_type=jnp.float32) + bqkv_ref[0]

    # per-(batch, head) softmax(QK^T/sqrt(dh)) V, heads split by static column
    # slices, batches by static row slices (rows are batch-major: b*S + s).
    for b in range(B):
        r0 = b * S
        for h in range(H):
            c0 = h * dh
            q = qkv[r0:r0 + S, c0:c0 + dh]                   # (S, dh)
            k = qkv[r0:r0 + S, D + c0:D + c0 + dh]           # (S, dh)
            v = qkv[r0:r0 + S, 2 * D + c0:2 * D + c0 + dh]   # (S, dh)
            s = jax.lax.dot_general(                         # q @ k^T without a transpose
                q, k, (((1,), (1,)), ((), ())),
                preferred_element_type=jnp.float32) * scale  # (S, S)
            m = jnp.max(s, axis=-1, keepdims=True)
            e = jnp.exp(s - m)
            p = e / jnp.sum(e, axis=-1, keepdims=True)
            ctx_ref[r0:r0 + S, c0:c0 + dh] = jnp.dot(
                p, v, preferred_element_type=jnp.float32)

    attn = jnp.dot(ctx_ref[...], wo_ref[0],
                   preferred_element_type=jnp.float32) + bo_ref[0]
    y = _layernorm(x + attn, ln1g_ref[0], ln1b_ref[0], eps)  # norm1(x + attn)

    # ---- feed-forward ---------------------------------------------------------
    ff = jnp.maximum(
        jnp.dot(y, w1_ref[0], preferred_element_type=jnp.float32) + b1_ref[0], 0.0)
    ff = jnp.dot(ff, w2_ref[0], preferred_element_type=jnp.float32) + b2_ref[0]
    z = _layernorm(y + ff, ln2g_ref[0], ln2b_ref[0], eps)    # norm2(y + ff)

    out_ref[...] = z.astype(out_ref.dtype)


# ----------------------------- Model wrapper -----------------------------

@functools.partial(jax.jit, static_argnames=("nhead",))
def generator_forward(noise, params, nhead):
    """noise: (S, B, D) -> (S, B, D), matching PyTorch sequence-first layout."""
    S, B, D = noise.shape
    dh = D // nhead
    L = params["Wqkv"].shape[0]

    # Positional-encoding add folded in as a single plain-JAX broadcast add,
    # then reshape to a batch-major lane-dense slab (B*S, D).
    x0 = (noise + params["pe"][:S]).transpose(1, 0, 2).reshape(B * S, D)

    kernel = functools.partial(
        _fused_encoder_kernel, B=B, S=S, H=nhead, dh=dh, eps=1e-5)

    def wspec(arr):                        # one layer's slice per grid step
        return pl.BlockSpec((1,) + arr.shape[1:], lambda l: (l, 0, 0))

    slab_spec = pl.BlockSpec((B * S, D), lambda l: (0, 0))   # VMEM-resident

    out = pl.pallas_call(
        kernel,
        out_shape=jax.ShapeDtypeStruct((B * S, D), noise.dtype),
        grid=(L,),
        in_specs=[
            slab_spec,
            wspec(params["Wqkv"]), wspec(params["bqkv"]),
            wspec(params["Wo"]), wspec(params["bo"]),
            wspec(params["W1"]), wspec(params["b1"]),
            wspec(params["W2"]), wspec(params["b2"]),
            wspec(params["ln1_g"]), wspec(params["ln1_b"]),
            wspec(params["ln2_g"]), wspec(params["ln2_b"]),
        ],
        out_specs=slab_spec,
        scratch_shapes=[pltpu.VMEM((B * S, D), jnp.float32)],   # attention context
        compiler_params=pltpu.CompilerParams(
            dimension_semantics=("arbitrary",)),                # layers are sequential
    )(x0, params["Wqkv"], params["bqkv"], params["Wo"], params["bo"],
      params["W1"], params["b1"], params["W2"], params["b2"],
      params["ln1_g"], params["ln1_b"], params["ln2_g"], params["ln2_b"])

    return out.reshape(B, S, D).transpose(1, 0, 2)


# ----------------------------- Parameter init -----------------------------

def sinusoidal_pe(max_len, d_model):
    position = jnp.arange(max_len, dtype=jnp.float32)[:, None]
    div_term = jnp.exp(
        jnp.arange(0, d_model, 2, dtype=jnp.float32) * (-math.log(10000.0) / d_model))
    pe = jnp.zeros((max_len, d_model), jnp.float32)
    pe = pe.at[:, 0::2].set(jnp.sin(position * div_term))
    pe = pe.at[:, 1::2].set(jnp.cos(position * div_term))
    return pe[:, None, :]                                    # (max_len, 1, d_model)


def init_params(key, d_model, nhead, dim_ff, num_layers, max_len):
    scale = 0.05
    keys = jax.random.split(key, 4 * num_layers)

    def per_layer(i):
        k1, k2, k3, k4 = keys[4 * i: 4 * i + 4]
        # PyTorch-convention shapes (Dout, Din); in_proj_weight = [Wq; Wk; Wv].
        Wqkv = scale * jax.random.normal(k1, (3 * d_model, d_model), jnp.float32)
        Wo = scale * jax.random.normal(k2, (d_model, d_model), jnp.float32)
        W1 = scale * jax.random.normal(k3, (dim_ff, d_model), jnp.float32)
        W2 = scale * jax.random.normal(k4, (d_model, dim_ff), jnp.float32)
        return Wqkv, Wo, W1, W2

    Wqkv, Wo, W1, W2 = (jnp.stack(t)
                        for t in zip(*[per_layer(i) for i in range(num_layers)]))
    L = num_layers
    return {
        "pe": sinusoidal_pe(max_len, d_model),
        # Pre-transposed to (L, Din, Dout) so the kernel feeds the MXU directly.
        "Wqkv": Wqkv.transpose(0, 2, 1),
        "bqkv": jnp.zeros((L, 1, 3 * d_model), jnp.float32),
        "Wo": Wo.transpose(0, 2, 1),
        "bo": jnp.zeros((L, 1, d_model), jnp.float32),
        "W1": W1.transpose(0, 2, 1),
        "b1": jnp.zeros((L, 1, dim_ff), jnp.float32),
        "W2": W2.transpose(0, 2, 1),
        "b2": jnp.zeros((L, 1, d_model), jnp.float32),
        "ln1_g": jnp.ones((L, 1, d_model), jnp.float32),
        "ln1_b": jnp.zeros((L, 1, d_model), jnp.float32),
        "ln2_g": jnp.ones((L, 1, d_model), jnp.float32),
        "ln2_b": jnp.zeros((L, 1, d_model), jnp.float32),
    }


# ----------------------------- Main -----------------------------

if __name__ == "__main__":
    # Small shapes (module uses d_model=768, nhead=8, seqLen=50, 6 layers).
    SEQ, BATCH, D_MODEL, NHEAD, DIM_FF, NUM_LAYERS = 8, 2, 64, 4, 128, 6

    key = jax.random.PRNGKey(0)
    key_noise, key_params = jax.random.split(key)

    noise = jax.random.normal(key_noise, (SEQ, BATCH, D_MODEL), jnp.float32)
    params = init_params(key_params, D_MODEL, NHEAD, DIM_FF, NUM_LAYERS, max_len=SEQ)

    out = generator_forward(noise, params, NHEAD)
    out = jax.block_until_ready(out)

    assert out.shape == (SEQ, BATCH, D_MODEL), out.shape
    assert jnp.all(jnp.isfinite(out)), "non-finite output"
    print("KERNEL_OK")
</pallas_src>

<mosaic_0001>
module attributes {stable_mosaic.version = 11 : i64} {
  func.func @_fused_encoder_kernel(%arg0: i32, %arg1: memref<16x64xf32, #tpu.memory_space<vmem>>, %arg2: memref<1x64x192xf32, #tpu.memory_space<vmem>>, %arg3: memref<1x1x192xf32, #tpu.memory_space<vmem>>, %arg4: memref<1x64x64xf32, #tpu.memory_space<vmem>>, %arg5: memref<1x1x64xf32, #tpu.memory_space<vmem>>, %arg6: memref<1x64x128xf32, #tpu.memory_space<vmem>>, %arg7: memref<1x1x128xf32, #tpu.memory_space<vmem>>, %arg8: memref<1x128x64xf32, #tpu.memory_space<vmem>>, %arg9: memref<1x1x64xf32, #tpu.memory_space<vmem>>, %arg10: memref<1x1x64xf32, #tpu.memory_space<vmem>>, %arg11: memref<1x1x64xf32, #tpu.memory_space<vmem>>, %arg12: memref<1x1x64xf32, #tpu.memory_space<vmem>>, %arg13: memref<1x1x64xf32, #tpu.memory_space<vmem>>, %arg14: memref<16x64xf32, #tpu.memory_space<vmem>>, %arg15: memref<16x64xf32, #tpu.memory_space<vmem>>) attributes {dimension_semantics = [#tpu.dimension_semantics<arbitrary>], iteration_bounds = array<i64: 6>, scalar_prefetch = 0 : i64, scratch_operands = 1 : i64, tpu.core_type = #tpu.core_type<tc>, window_params = [{pipeline_mode = #tpu.pipeline_mode<synchronous>, transform_indices = @transform_0, window_bounds = array<i64: 16, 64>}, {transform_indices = @transform_1, window_bounds = array<i64: 1, 64, 192>}, {transform_indices = @transform_2, window_bounds = array<i64: 1, 1, 192>}, {transform_indices = @transform_3, window_bounds = array<i64: 1, 64, 64>}, {transform_indices = @transform_4, window_bounds = array<i64: 1, 1, 64>}, {transform_indices = @transform_5, window_bounds = array<i64: 1, 64, 128>}, {transform_indices = @transform_6, window_bounds = array<i64: 1, 1, 128>}, {transform_indices = @transform_7, window_bounds = array<i64: 1, 128, 64>}, {transform_indices = @transform_8, window_bounds = array<i64: 1, 1, 64>}, {transform_indices = @transform_9, window_bounds = array<i64: 1, 1, 64>}, {transform_indices = @transform_10, window_bounds = array<i64: 1, 1, 64>}, {transform_indices = @transform_11, window_bounds = array<i64: 1, 1, 64>}, {transform_indices = @transform_12, window_bounds = array<i64: 1, 1, 64>}, {pipeline_mode = #tpu.pipeline_mode<synchronous>, transform_indices = @transform_13, window_bounds = array<i64: 16, 64>}]} {
    %c0_i32 = arith.constant 0 : i32
    %0 = arith.cmpi eq, %arg0, %c0_i32 : i32
    %1 = arith.extui %0 : i1 to i32
    %c0_i32_0 = arith.constant 0 : i32
    %2 = arith.cmpi ne, %1, %c0_i32_0 : i32
    scf.if %2 {
      %c0_108 = arith.constant 0 : index
      %c0_109 = arith.constant 0 : index
      %222 = vector.load %arg1[%c0_108, %c0_109] : memref<16x64xf32, #tpu.memory_space<vmem>>, vector<16x64xf32>
      %c0_110 = arith.constant 0 : index
      %c0_111 = arith.constant 0 : index
      %223 = vector.load %arg14[%c0_110, %c0_111] : memref<16x64xf32, #tpu.memory_space<vmem>>, vector<16x64xf32>
      tpu.vector_store %arg14[%c0_110, %c0_111], %222 {strides = array<i32>} : memref<16x64xf32, #tpu.memory_space<vmem>>, vector<16x64xf32>,
    } else {
    }
    %c0 = arith.constant 0 : index
    %c0_1 = arith.constant 0 : index
    %3 = vector.load %arg14[%c0, %c0_1] : memref<16x64xf32, #tpu.memory_space<vmem>>, vector<16x64xf32>
    %c0_2 = arith.constant 0 : index
    %c0_3 = arith.constant 0 : index
    %c0_4 = arith.constant 0 : index
    %4 = vector.load %arg2[%c0_2, %c0_3, %c0_4] : memref<1x64x192xf32, #tpu.memory_space<vmem>>, vector<1x64x192xf32>
    %5 = vector.shape_cast %4 : vector<1x64x192xf32> to vector<64x192xf32>
    %cst = arith.constant dense<0.000000e+00> : vector<16x192xf32>
    %6 = tpu.matmul %3, %5, %cst {dimension_numbers = #tpu.dot_dimension_numbers<[1], [0], [0], [1], [0, 0, 1, 1], [], []>} : vector<16x64xf32>, vector<64x192xf32>, vector<16x192xf32> -> vector<16x192xf32>
    %c0_5 = arith.constant 0 : index
    %c0_6 = arith.constant 0 : index
    %c0_7 = arith.constant 0 : index
    %7 = vector.load %arg3[%c0_5, %c0_6, %c0_7] : memref<1x1x192xf32, #tpu.memory_space<vmem>>, vector<1x1x192xf32>
    %8 = vector.shape_cast %7 : vector<1x1x192xf32> to vector<1x192xf32>
    %9 = vector.broadcast %8 : vector<1x192xf32> to vector<16x192xf32>
    %10 = arith.addf %6, %9 : vector<16x192xf32>
    %11 = vector.extract_strided_slice %10 {offsets = [0, 0], sizes = [8, 16], strides = [1, 1]} : vector<16x192xf32> to vector<8x16xf32>
    %12 = vector.extract_strided_slice %10 {offsets = [0, 64], sizes = [8, 16], strides = [1, 1]} : vector<16x192xf32> to vector<8x16xf32>
    %13 = vector.extract_strided_slice %10 {offsets = [0, 128], sizes = [8, 16], strides = [1, 1]} : vector<16x192xf32> to vector<8x16xf32>
    %cst_8 = arith.constant dense<0.000000e+00> : vector<8x8xf32>
    %14 = tpu.matmul %11, %12, %cst_8 {dimension_numbers = #tpu.dot_dimension_numbers<[1], [1], [0], [0], [0, 0, 1, 0], [], []>} : vector<8x16xf32>, vector<8x16xf32>, vector<8x8xf32> -> vector<8x8xf32>
    %cst_9 = arith.constant 2.500000e-01 : f32
    %15 = vector.broadcast %cst_9 : f32 to vector<8x8xf32>
    %16 = arith.mulf %14, %15 : vector<8x8xf32>
    %cst_10 = arith.constant dense<0xFF800000> : vector<8xf32>
    %17 = vector.multi_reduction <maximumf>, %16, %cst_10 [1] : vector<8x8xf32> to vector<8xf32>
    %18 = vector.shape_cast %17 : vector<8xf32> to vector<8x1xf32>
    %19 = vector.broadcast %18 : vector<8x1xf32> to vector<8x8xf32>
    %20 = arith.subf %16, %19 : vector<8x8xf32>
    %21 = math.exp %20 : vector<8x8xf32>
    %cst_11 = arith.constant dense<0.000000e+00> : vector<8xf32>
    %22 = vector.multi_reduction <add>, %21, %cst_11 [1] : vector<8x8xf32> to vector<8xf32>
    %23 = vector.shape_cast %22 : vector<8xf32> to vector<8x1xf32>
    %24 = vector.broadcast %23 : vector<8x1xf32> to vector<8x8xf32>
    %25 = arith.divf %21, %24 : vector<8x8xf32>
    %cst_12 = arith.constant dense<0.000000e+00> : vector<8x16xf32>
    %26 = tpu.matmul %25, %13, %cst_12 {dimension_numbers = #tpu.dot_dimension_numbers<[1], [0], [0], [1], [0, 0, 1, 1], [], []>} : vector<8x8xf32>, vector<8x16xf32>, vector<8x16xf32> -> vector<8x16xf32>
    %c0_13 = arith.constant 0 : index
    %c0_14 = arith.constant 0 : index
    %27 = vector.load %arg15[%c0_13, %c0_14] : memref<16x64xf32, #tpu.memory_space<vmem>>, vector<8x16xf32>
    tpu.vector_store %arg15[%c0_13, %c0_14], %26 {strides = array<i32>} : memref<16x64xf32, #tpu.memory_space<vmem>>, vector<8x16xf32>,
    %28 = vector.extract_strided_slice %10 {offsets = [0, 16], sizes = [8, 16], strides = [1, 1]} : vector<16x192xf32> to vector<8x16xf32>
    %29 = vector.extract_strided_slice %10 {offsets = [0, 80], sizes = [8, 16], strides = [1, 1]} : vector<16x192xf32> to vector<8x16xf32>
    %30 = vector.extract_strided_slice %10 {offsets = [0, 144], sizes = [8, 16], strides = [1, 1]} : vector<16x192xf32> to vector<8x16xf32>
    %cst_15 = arith.constant dense<0.000000e+00> : vector<8x8xf32>
    %31 = tpu.matmul %28, %29, %cst_15 {dimension_numbers = #tpu.dot_dimension_numbers<[1], [1], [0], [0], [0, 0, 1, 0], [], []>} : vector<8x16xf32>, vector<8x16xf32>, vector<8x8xf32> -> vector<8x8xf32>
    %cst_16 = arith.constant 2.500000e-01 : f32
    %32 = vector.broadcast %cst_16 : f32 to vector<8x8xf32>
    %33 = arith.mulf %31, %32 : vector<8x8xf32>
    %cst_17 = arith.constant dense<0xFF800000> : vector<8xf32>
    %34 = vector.multi_reduction <maximumf>, %33, %cst_17 [1] : vector<8x8xf32> to vector<8xf32>
    %35 = vector.shape_cast %34 : vector<8xf32> to vector<8x1xf32>
    %36 = vector.broadcast %35 : vector<8x1xf32> to vector<8x8xf32>
    %37 = arith.subf %33, %36 : vector<8x8xf32>
    %38 = math.exp %37 : vector<8x8xf32>
    %cst_18 = arith.constant dense<0.000000e+00> : vector<8xf32>
    %39 = vector.multi_reduction <add>, %38, %cst_18 [1] : vector<8x8xf32> to vector<8xf32>
    %40 = vector.shape_cast %39 : vector<8xf32> to vector<8x1xf32>
    %41 = vector.broadcast %40 : vector<8x1xf32> to vector<8x8xf32>
    %42 = arith.divf %38, %41 : vector<8x8xf32>
    %cst_19 = arith.constant dense<0.000000e+00> : vector<8x16xf32>
    %43 = tpu.matmul %42, %30, %cst_19 {dimension_numbers = #tpu.dot_dimension_numbers<[1], [0], [0], [1], [0, 0, 1, 1], [], []>} : vector<8x8xf32>, vector<8x16xf32>, vector<8x16xf32> -> vector<8x16xf32>
    %c0_20 = arith.constant 0 : index
    %c16 = arith.constant 16 : index
    %44 = vector.load %arg15[%c0_20, %c16] : memref<16x64xf32, #tpu.memory_space<vmem>>, vector<8x16xf32>
    tpu.vector_store %arg15[%c0_20, %c16], %43 {strides = array<i32>} : memref<16x64xf32, #tpu.memory_space<vmem>>, vector<8x16xf32>,
    %45 = vector.extract_strided_slice %10 {offsets = [0, 32], sizes = [8, 16], strides = [1, 1]} : vector<16x192xf32> to vector<8x16xf32>
    %46 = vector.extract_strided_slice %10 {offsets = [0, 96], sizes = [8, 16], strides = [1, 1]} : vector<16x192xf32> to vector<8x16xf32>
    %47 = vector.extract_strided_slice %10 {offsets = [0, 160], sizes = [8, 16], strides = [1, 1]} : vector<16x192xf32> to vector<8x16xf32>
    %cst_21 = arith.constant dense<0.000000e+00> : vector<8x8xf32>
    %48 = tpu.matmul %45, %46, %cst_21 {dimension_numbers = #tpu.dot_dimension_numbers<[1], [1], [0], [0], [0, 0, 1, 0], [], []>} : vector<8x16xf32>, vector<8x16xf32>, vector<8x8xf32> -> vector<8x8xf32>
    %cst_22 = arith.constant 2.500000e-01 : f32
    %49 = vector.broadcast %cst_22 : f32 to vector<8x8xf32>
    %50 = arith.mulf %48, %49 : vector<8x8xf32>
    %cst_23 = arith.constant dense<0xFF800000> : vector<8xf32>
    %51 = vector.multi_reduction <maximumf>, %50, %cst_23 [1] : vector<8x8xf32> to vector<8xf32>
    %52 = vector.shape_cast %51 : vector<8xf32> to vector<8x1xf32>
    %53 = vector.broadcast %52 : vector<8x1xf32> to vector<8x8xf32>
    %54 = arith.subf %50, %53 : vector<8x8xf32>
    %55 = math.exp %54 : vector<8x8xf32>
    %cst_24 = arith.constant dense<0.000000e+00> : vector<8xf32>
    %56 = vector.multi_reduction <add>, %55, %cst_24 [1] : vector<8x8xf32> to vector<8xf32>
    %57 = vector.shape_cast %56 : vector<8xf32> to vector<8x1xf32>
    %58 = vector.broadcast %57 : vector<8x1xf32> to vector<8x8xf32>
    %59 = arith.divf %55, %58 : vector<8x8xf32>
    %cst_25 = arith.constant dense<0.000000e+00> : vector<8x16xf32>
    %60 = tpu.matmul %59, %47, %cst_25 {dimension_numbers = #tpu.dot_dimension_numbers<[1], [0], [0], [1], [0, 0, 1, 1], [], []>} : vector<8x8xf32>, vector<8x16xf32>, vector<8x16xf32> -> vector<8x16xf32>
    %c0_26 = arith.constant 0 : index
    %c32 = arith.constant 32 : index
    %61 = vector.load %arg15[%c0_26, %c32] : memref<16x64xf32, #tpu.memory_space<vmem>>, vector<8x16xf32>
    tpu.vector_store %arg15[%c0_26, %c32], %60 {strides = array<i32>} : memref<16x64xf32, #tpu.memory_space<vmem>>, vector<8x16xf32>,
    %62 = vector.extract_strided_slice %10 {offsets = [0, 48], sizes = [8, 16], strides = [1, 1]} : vector<16x192xf32> to vector<8x16xf32>
    %63 = vector.extract_strided_slice %10 {offsets = [0, 112], sizes = [8, 16], strides = [1, 1]} : vector<16x192xf32> to vector<8x16xf32>
    %64 = vector.extract_strided_slice %10 {offsets = [0, 176], sizes = [8, 16], strides = [1, 1]} : vector<16x192xf32> to vector<8x16xf32>
    %cst_27 = arith.constant dense<0.000000e+00> : vector<8x8xf32>
    %65 = tpu.matmul %62, %63, %cst_27 {dimension_numbers = #tpu.dot_dimension_numbers<[1], [1], [0], [0], [0, 0, 1, 0], [], []>} : vector<8x16xf32>, vector<8x16xf32>, vector<8x8xf32> -> vector<8x8xf32>
    %cst_28 = arith.constant 2.500000e-01 : f32
    %66 = vector.broadcast %cst_28 : f32 to vector<8x8xf32>
    %67 = arith.mulf %65, %66 : vector<8x8xf32>
    %cst_29 = arith.constant dense<0xFF800000> : vector<8xf32>
    %68 = vector.multi_reduction <maximumf>, %67, %cst_29 [1] : vector<8x8xf32> to vector<8xf32>
    %69 = vector.shape_cast %68 : vector<8xf32> to vector<8x1xf32>
    %70 = vector.broadcast %69 : vector<8x1xf32> to vector<8x8xf32>
    %71 = arith.subf %67, %70 : vector<8x8xf32>
    %72 = math.exp %71 : vector<8x8xf32>
    %cst_30 = arith.constant dense<0.000000e+00> : vector<8xf32>
    %73 = vector.multi_reduction <add>, %72, %cst_30 [1] : vector<8x8xf32> to vector<8xf32>
    %74 = vector.shape_cast %73 : vector<8xf32> to vector<8x1xf32>
    %75 = vector.broadcast %74 : vector<8x1xf32> to vector<8x8xf32>
    %76 = arith.divf %72, %75 : vector<8x8xf32>
    %cst_31 = arith.constant dense<0.000000e+00> : vector<8x16xf32>
    %77 = tpu.matmul %76, %64, %cst_31 {dimension_numbers = #tpu.dot_dimension_numbers<[1], [0], [0], [1], [0, 0, 1, 1], [], []>} : vector<8x8xf32>, vector<8x16xf32>, vector<8x16xf32> -> vector<8x16xf32>
    %c0_32 = arith.constant 0 : index
    %c48 = arith.constant 48 : index
    %78 = vector.load %arg15[%c0_32, %c48] : memref<16x64xf32, #tpu.memory_space<vmem>>, vector<8x16xf32>
    tpu.vector_store %arg15[%c0_32, %c48], %77 {strides = array<i32>} : memref<16x64xf32, #tpu.memory_space<vmem>>, vector<8x16xf32>,
    %79 = vector.extract_strided_slice %10 {offsets = [8, 0], sizes = [8, 16], strides = [1, 1]} : vector<16x192xf32> to vector<8x16xf32>
    %80 = vector.extract_strided_slice %10 {offsets = [8, 64], sizes = [8, 16], strides = [1, 1]} : vector<16x192xf32> to vector<8x16xf32>
    %81 = vector.extract_strided_slice %10 {offsets = [8, 128], sizes = [8, 16], strides = [1, 1]} : vector<16x192xf32> to vector<8x16xf32>
    %cst_33 = arith.constant dense<0.000000e+00> : vector<8x8xf32>
    %82 = tpu.matmul %79, %80, %cst_33 {dimension_numbers = #tpu.dot_dimension_numbers<[1], [1], [0], [0], [0, 0, 1, 0], [], []>} : vector<8x16xf32>, vector<8x16xf32>, vector<8x8xf32> -> vector<8x8xf32>
    %cst_34 = arith.constant 2.500000e-01 : f32
    %83 = vector.broadcast %cst_34 : f32 to vector<8x8xf32>
    %84 = arith.mulf %82, %83 : vector<8x8xf32>
    %cst_35 = arith.constant dense<0xFF800000> : vector<8xf32>
    %85 = vector.multi_reduction <maximumf>, %84, %cst_35 [1] : vector<8x8xf32> to vector<8xf32>
    %86 = vector.shape_cast %85 : vector<8xf32> to vector<8x1xf32>
    %87 = vector.broadcast %86 : vector<8x1xf32> to vector<8x8xf32>
    %88 = arith.subf %84, %87 : vector<8x8xf32>
    %89 = math.exp %88 : vector<8x8xf32>
    %cst_36 = arith.constant dense<0.000000e+00> : vector<8xf32>
    %90 = vector.multi_reduction <add>, %89, %cst_36 [1] : vector<8x8xf32> to vector<8xf32>
    %91 = vector.shape_cast %90 : vector<8xf32> to vector<8x1xf32>
    %92 = vector.broadcast %91 : vector<8x1xf32> to vector<8x8xf32>
    %93 = arith.divf %89, %92 : vector<8x8xf32>
    %cst_37 = arith.constant dense<0.000000e+00> : vector<8x16xf32>
    %94 = tpu.matmul %93, %81, %cst_37 {dimension_numbers = #tpu.dot_dimension_numbers<[1], [0], [0], [1], [0, 0, 1, 1], [], []>} : vector<8x8xf32>, vector<8x16xf32>, vector<8x16xf32> -> vector<8x16xf32>
    %c8 = arith.constant 8 : index
    %c0_38 = arith.constant 0 : index
    %95 = vector.load %arg15[%c8, %c0_38] : memref<16x64xf32, #tpu.memory_space<vmem>>, vector<8x16xf32>
    tpu.vector_store %arg15[%c8, %c0_38], %94 {strides = array<i32>} : memref<16x64xf32, #tpu.memory_space<vmem>>, vector<8x16xf32>,
    %96 = vector.extract_strided_slice %10 {offsets = [8, 16], sizes = [8, 16], strides = [1, 1]} : vector<16x192xf32> to vector<8x16xf32>
    %97 = vector.extract_strided_slice %10 {offsets = [8, 80], sizes = [8, 16], strides = [1, 1]} : vector<16x192xf32> to vector<8x16xf32>
    %98 = vector.extract_strided_slice %10 {offsets = [8, 144], sizes = [8, 16], strides = [1, 1]} : vector<16x192xf32> to vector<8x16xf32>
    %cst_39 = arith.constant dense<0.000000e+00> : vector<8x8xf32>
    %99 = tpu.matmul %96, %97, %cst_39 {dimension_numbers = #tpu.dot_dimension_numbers<[1], [1], [0], [0], [0, 0, 1, 0], [], []>} : vector<8x16xf32>, vector<8x16xf32>, vector<8x8xf32> -> vector<8x8xf32>
    %cst_40 = arith.constant 2.500000e-01 : f32
    %100 = vector.broadcast %cst_40 : f32 to vector<8x8xf32>
    %101 = arith.mulf %99, %100 : vector<8x8xf32>
    %cst_41 = arith.constant dense<0xFF800000> : vector<8xf32>
    %102 = vector.multi_reduction <maximumf>, %101, %cst_41 [1] : vector<8x8xf32> to vector<8xf32>
    %103 = vector.shape_cast %102 : vector<8xf32> to vector<8x1xf32>
    %104 = vector.broadcast %103 : vector<8x1xf32> to vector<8x8xf32>
    %105 = arith.subf %101, %104 : vector<8x8xf32>
    %106 = math.exp %105 : vector<8x8xf32>
    %cst_42 = arith.constant dense<0.000000e+00> : vector<8xf32>
    %107 = vector.multi_reduction <add>, %106, %cst_42 [1] : vector<8x8xf32> to vector<8xf32>
    %108 = vector.shape_cast %107 : vector<8xf32> to vector<8x1xf32>
    %109 = vector.broadcast %108 : vector<8x1xf32> to vector<8x8xf32>
    %110 = arith.divf %106, %109 : vector<8x8xf32>
    %cst_43 = arith.constant dense<0.000000e+00> : vector<8x16xf32>
    %111 = tpu.matmul %110, %98, %cst_43 {dimension_numbers = #tpu.dot_dimension_numbers<[1], [0], [0], [1], [0, 0, 1, 1], [], []>} : vector<8x8xf32>, vector<8x16xf32>, vector<8x16xf32> -> vector<8x16xf32>
    %c8_44 = arith.constant 8 : index
    %c16_45 = arith.constant 16 : index
    %112 = vector.load %arg15[%c8_44, %c16_45] : memref<16x64xf32, #tpu.memory_space<vmem>>, vector<8x16xf32>
    tpu.vector_store %arg15[%c8_44, %c16_45], %111 {strides = array<i32>} : memref<16x64xf32, #tpu.memory_space<vmem>>, vector<8x16xf32>,
    %113 = vector.extract_strided_slice %10 {offsets = [8, 32], sizes = [8, 16], strides = [1, 1]} : vector<16x192xf32> to vector<8x16xf32>
    %114 = vector.extract_strided_slice %10 {offsets = [8, 96], sizes = [8, 16], strides = [1, 1]} : vector<16x192xf32> to vector<8x16xf32>
    %115 = vector.extract_strided_slice %10 {offsets = [8, 160], sizes = [8, 16], strides = [1, 1]} : vector<16x192xf32> to vector<8x16xf32>
    %cst_46 = arith.constant dense<0.000000e+00> : vector<8x8xf32>
    %116 = tpu.matmul %113, %114, %cst_46 {dimension_numbers = #tpu.dot_dimension_numbers<[1], [1], [0], [0], [0, 0, 1, 0], [], []>} : vector<8x16xf32>, vector<8x16xf32>, vector<8x8xf32> -> vector<8x8xf32>
    %cst_47 = arith.constant 2.500000e-01 : f32
    %117 = vector.broadcast %cst_47 : f32 to vector<8x8xf32>
    %118 = arith.mulf %116, %117 : vector<8x8xf32>
    %cst_48 = arith.constant dense<0xFF800000> : vector<8xf32>
    %119 = vector.multi_reduction <maximumf>, %118, %cst_48 [1] : vector<8x8xf32> to vector<8xf32>
    %120 = vector.shape_cast %119 : vector<8xf32> to vector<8x1xf32>
    %121 = vector.broadcast %120 : vector<8x1xf32> to vector<8x8xf32>
    %122 = arith.subf %118, %121 : vector<8x8xf32>
    %123 = math.exp %122 : vector<8x8xf32>
    %cst_49 = arith.constant dense<0.000000e+00> : vector<8xf32>
    %124 = vector.multi_reduction <add>, %123, %cst_49 [1] : vector<8x8xf32> to vector<8xf32>
    %125 = vector.shape_cast %124 : vector<8xf32> to vector<8x1xf32>
    %126 = vector.broadcast %125 : vector<8x1xf32> to vector<8x8xf32>
    %127 = arith.divf %123, %126 : vector<8x8xf32>
    %cst_50 = arith.constant dense<0.000000e+00> : vector<8x16xf32>
    %128 = tpu.matmul %127, %115, %cst_50 {dimension_numbers = #tpu.dot_dimension_numbers<[1], [0], [0], [1], [0, 0, 1, 1], [], []>} : vector<8x8xf32>, vector<8x16xf32>, vector<8x16xf32> -> vector<8x16xf32>
    %c8_51 = arith.constant 8 : index
    %c32_52 = arith.constant 32 : index
    %129 = vector.load %arg15[%c8_51, %c32_52] : memref<16x64xf32, #tpu.memory_space<vmem>>, vector<8x16xf32>
    tpu.vector_store %arg15[%c8_51, %c32_52], %128 {strides = array<i32>} : memref<16x64xf32, #tpu.memory_space<vmem>>, vector<8x16xf32>,
    %130 = vector.extract_strided_slice %10 {offsets = [8, 48], sizes = [8, 16], strides = [1, 1]} : vector<16x192xf32> to vector<8x16xf32>
    %131 = vector.extract_strided_slice %10 {offsets = [8, 112], sizes = [8, 16], strides = [1, 1]} : vector<16x192xf32> to vector<8x16xf32>
    %132 = vector.extract_strided_slice %10 {offsets = [8, 176], sizes = [8, 16], strides = [1, 1]} : vector<16x192xf32> to vector<8x16xf32>
    %cst_53 = arith.constant dense<0.000000e+00> : vector<8x8xf32>
    %133 = tpu.matmul %130, %131, %cst_53 {dimension_numbers = #tpu.dot_dimension_numbers<[1], [1], [0], [0], [0, 0, 1, 0], [], []>} : vector<8x16xf32>, vector<8x16xf32>, vector<8x8xf32> -> vector<8x8xf32>
    %cst_54 = arith.constant 2.500000e-01 : f32
    %134 = vector.broadcast %cst_54 : f32 to vector<8x8xf32>
    %135 = arith.mulf %133, %134 : vector<8x8xf32>
    %cst_55 = arith.constant dense<0xFF800000> : vector<8xf32>
    %136 = vector.multi_reduction <maximumf>, %135, %cst_55 [1] : vector<8x8xf32> to vector<8xf32>
    %137 = vector.shape_cast %136 : vector<8xf32> to vector<8x1xf32>
    %138 = vector.broadcast %137 : vector<8x1xf32> to vector<8x8xf32>
    %139 = arith.subf %135, %138 : vector<8x8xf32>
    %140 = math.exp %139 : vector<8x8xf32>
    %cst_56 = arith.constant dense<0.000000e+00> : vector<8xf32>
    %141 = vector.multi_reduction <add>, %140, %cst_56 [1] : vector<8x8xf32> to vector<8xf32>
    %142 = vector.shape_cast %141 : vector<8xf32> to vector<8x1xf32>
    %143 = vector.broadcast %142 : vector<8x1xf32> to vector<8x8xf32>
    %144 = arith.divf %140, %143 : vector<8x8xf32>
    %cst_57 = arith.constant dense<0.000000e+00> : vector<8x16xf32>
    %145 = tpu.matmul %144, %132, %cst_57 {dimension_numbers = #tpu.dot_dimension_numbers<[1], [0], [0], [1], [0, 0, 1, 1], [], []>} : vector<8x8xf32>, vector<8x16xf32>, vector<8x16xf32> -> vector<8x16xf32>
    %c8_58 = arith.constant 8 : index
    %c48_59 = arith.constant 48 : index
    %146 = vector.load %arg15[%c8_58, %c48_59] : memref<16x64xf32, #tpu.memory_space<vmem>>, vector<8x16xf32>
    tpu.vector_store %arg15[%c8_58, %c48_59], %145 {strides = array<i32>} : memref<16x64xf32, #tpu.memory_space<vmem>>, vector<8x16xf32>,
    %c0_60 = arith.constant 0 : index
    %c0_61 = arith.constant 0 : index
    %147 = vector.load %arg15[%c0_60, %c0_61] : memref<16x64xf32, #tpu.memory_space<vmem>>, vector<16x64xf32>
    %c0_62 = arith.constant 0 : index
    %c0_63 = arith.constant 0 : index
    %c0_64 = arith.constant 0 : index
    %148 = vector.load %arg4[%c0_62, %c0_63, %c0_64] : memref<1x64x64xf32, #tpu.memory_space<vmem>>, vector<1x64x64xf32>
    %149 = vector.shape_cast %148 : vector<1x64x64xf32> to vector<64x64xf32>
    %cst_65 = arith.constant dense<0.000000e+00> : vector<16x64xf32>
    %150 = tpu.matmul %147, %149, %cst_65 {dimension_numbers = #tpu.dot_dimension_numbers<[1], [0], [0], [1], [0, 0, 1, 1], [], []>} : vector<16x64xf32>, vector<64x64xf32>, vector<16x64xf32> -> vector<16x64xf32>
    %c0_66 = arith.constant 0 : index
    %c0_67 = arith.constant 0 : index
    %c0_68 = arith.constant 0 : index
    %151 = vector.load %arg5[%c0_66, %c0_67, %c0_68] : memref<1x1x64xf32, #tpu.memory_space<vmem>>, vector<1x1x64xf32>
    %152 = vector.shape_cast %151 : vector<1x1x64xf32> to vector<1x64xf32>
    %153 = vector.broadcast %152 : vector<1x64xf32> to vector<16x64xf32>
    %154 = arith.addf %150, %153 : vector<16x64xf32>
    %155 = arith.addf %3, %154 : vector<16x64xf32>
    %c0_69 = arith.constant 0 : index
    %c0_70 = arith.constant 0 : index
    %c0_71 = arith.constant 0 : index
    %156 = vector.load %arg10[%c0_69, %c0_70, %c0_71] : memref<1x1x64xf32, #tpu.memory_space<vmem>>, vector<1x1x64xf32>
    %157 = vector.shape_cast %156 : vector<1x1x64xf32> to vector<1x64xf32>
    %c0_72 = arith.constant 0 : index
    %c0_73 = arith.constant 0 : index
    %c0_74 = arith.constant 0 : index
    %158 = vector.load %arg11[%c0_72, %c0_73, %c0_74] : memref<1x1x64xf32, #tpu.memory_space<vmem>>, vector<1x1x64xf32>
    %159 = vector.shape_cast %158 : vector<1x1x64xf32> to vector<1x64xf32>
    %cst_75 = arith.constant dense<0.000000e+00> : vector<16xf32>
    %160 = vector.multi_reduction <add>, %155, %cst_75 [1] : vector<16x64xf32> to vector<16xf32>
    %161 = vector.shape_cast %160 : vector<16xf32> to vector<16x1xf32>
    %cst_76 = arith.constant 6.400000e+01 : f32
    %162 = vector.broadcast %cst_76 : f32 to vector<16x1xf32>
    %163 = arith.divf %161, %162 : vector<16x1xf32>
    %164 = vector.broadcast %163 : vector<16x1xf32> to vector<16x64xf32>
    %165 = arith.subf %155, %164 : vector<16x64xf32>
    %166 = arith.mulf %165, %165 : vector<16x64xf32>
    %cst_77 = arith.constant dense<0.000000e+00> : vector<16xf32>
    %167 = vector.multi_reduction <add>, %166, %cst_77 [1] : vector<16x64xf32> to vector<16xf32>
    %168 = vector.shape_cast %167 : vector<16xf32> to vector<16x1xf32>
    %cst_78 = arith.constant 6.400000e+01 : f32
    %169 = vector.broadcast %cst_78 : f32 to vector<16x1xf32>
    %170 = arith.divf %168, %169 : vector<16x1xf32>
    %cst_79 = arith.constant 9.99999974E-6 : f32
    %171 = vector.broadcast %cst_79 : f32 to vector<16x1xf32>
    %172 = arith.addf %170, %171 : vector<16x1xf32>
    %173 = math.rsqrt %172 : vector<16x1xf32>
    %174 = vector.broadcast %173 : vector<16x1xf32> to vector<16x64xf32>
    %175 = arith.mulf %165, %174 : vector<16x64xf32>
    %176 = vector.broadcast %157 : vector<1x64xf32> to vector<16x64xf32>
    %177 = arith.mulf %175, %176 : vector<16x64xf32>
    %178 = vector.broadcast %159 : vector<1x64xf32> to vector<16x64xf32>
    %179 = arith.addf %177, %178 : vector<16x64xf32>
    %c0_80 = arith.constant 0 : index
    %c0_81 = arith.constant 0 : index
    %c0_82 = arith.constant 0 : index
    %180 = vector.load %arg6[%c0_80, %c0_81, %c0_82] : memref<1x64x128xf32, #tpu.memory_space<vmem>>, vector<1x64x128xf32>
    %181 = vector.shape_cast %180 : vector<1x64x128xf32> to vector<64x128xf32>
    %cst_83 = arith.constant dense<0.000000e+00> : vector<16x128xf32>
    %182 = tpu.matmul %179, %181, %cst_83 {dimension_numbers = #tpu.dot_dimension_numbers<[1], [0], [0], [1], [0, 0, 1, 1], [], []>} : vector<16x64xf32>, vector<64x128xf32>, vector<16x128xf32> -> vector<16x128xf32>
    %c0_84 = arith.constant 0 : index
    %c0_85 = arith.constant 0 : index
    %c0_86 = arith.constant 0 : index
    %183 = vector.load %arg7[%c0_84, %c0_85, %c0_86] : memref<1x1x128xf32, #tpu.memory_space<vmem>>, vector<1x1x128xf32>
    %184 = vector.shape_cast %183 : vector<1x1x128xf32> to vector<1x128xf32>
    %185 = vector.broadcast %184 : vector<1x128xf32> to vector<16x128xf32>
    %186 = arith.addf %182, %185 : vector<16x128xf32>
    %cst_87 = arith.constant 0.000000e+00 : f32
    %187 = vector.broadcast %cst_87 : f32 to vector<16x128xf32>
    %188 = arith.maximumf %186, %187 : vector<16x128xf32>
    %c0_88 = arith.constant 0 : index
    %c0_89 = arith.constant 0 : index
    %c0_90 = arith.constant 0 : index
    %189 = vector.load %arg8[%c0_88, %c0_89, %c0_90] : memref<1x128x64xf32, #tpu.memory_space<vmem>>, vector<1x128x64xf32>
    %190 = vector.shape_cast %189 : vector<1x128x64xf32> to vector<128x64xf32>
    %cst_91 = arith.constant dense<0.000000e+00> : vector<16x64xf32>
    %191 = tpu.matmul %188, %190, %cst_91 {dimension_numbers = #tpu.dot_dimension_numbers<[1], [0], [0], [1], [0, 0, 1, 1], [], []>} : vector<16x128xf32>, vector<128x64xf32>, vector<16x64xf32> -> vector<16x64xf32>
    %c0_92 = arith.constant 0 : index
    %c0_93 = arith.constant 0 : index
    %c0_94 = arith.constant 0 : index
    %192 = vector.load %arg9[%c0_92, %c0_93, %c0_94] : memref<1x1x64xf32, #tpu.memory_space<vmem>>, vector<1x1x64xf32>
    %193 = vector.shape_cast %192 : vector<1x1x64xf32> to vector<1x64xf32>
    %194 = vector.broadcast %193 : vector<1x64xf32> to vector<16x64xf32>
    %195 = arith.addf %191, %194 : vector<16x64xf32>
    %196 = arith.addf %179, %195 : vector<16x64xf32>
    %c0_95 = arith.constant 0 : index
    %c0_96 = arith.constant 0 : index
    %c0_97 = arith.constant 0 : index
    %197 = vector.load %arg12[%c0_95, %c0_96, %c0_97] : memref<1x1x64xf32, #tpu.memory_space<vmem>>, vector<1x1x64xf32>
    %198 = vector.shape_cast %197 : vector<1x1x64xf32> to vector<1x64xf32>
    %c0_98 = arith.constant 0 : index
    %c0_99 = arith.constant 0 : index
    %c0_100 = arith.constant 0 : index
    %199 = vector.load %arg13[%c0_98, %c0_99, %c0_100] : memref<1x1x64xf32, #tpu.memory_space<vmem>>, vector<1x1x64xf32>
    %200 = vector.shape_cast %199 : vector<1x1x64xf32> to vector<1x64xf32>
    %cst_101 = arith.constant dense<0.000000e+00> : vector<16xf32>
    %201 = vector.multi_reduction <add>, %196, %cst_101 [1] : vector<16x64xf32> to vector<16xf32>
    %202 = vector.shape_cast %201 : vector<16xf32> to vector<16x1xf32>
    %cst_102 = arith.constant 6.400000e+01 : f32
    %203 = vector.broadcast %cst_102 : f32 to vector<16x1xf32>
    %204 = arith.divf %202, %203 : vector<16x1xf32>
    %205 = vector.broadcast %204 : vector<16x1xf32> to vector<16x64xf32>
    %206 = arith.subf %196, %205 : vector<16x64xf32>
    %207 = arith.mulf %206, %206 : vector<16x64xf32>
    %cst_103 = arith.constant dense<0.000000e+00> : vector<16xf32>
    %208 = vector.multi_reduction <add>, %207, %cst_103 [1] : vector<16x64xf32> to vector<16xf32>
    %209 = vector.shape_cast %208 : vector<16xf32> to vector<16x1xf32>
    %cst_104 = arith.constant 6.400000e+01 : f32
    %210 = vector.broadcast %cst_104 : f32 to vector<16x1xf32>
    %211 = arith.divf %209, %210 : vector<16x1xf32>
    %cst_105 = arith.constant 9.99999974E-6 : f32
    %212 = vector.broadcast %cst_105 : f32 to vector<16x1xf32>
    %213 = arith.addf %211, %212 : vector<16x1xf32>
    %214 = math.rsqrt %213 : vector<16x1xf32>
    %215 = vector.broadcast %214 : vector<16x1xf32> to vector<16x64xf32>
    %216 = arith.mulf %206, %215 : vector<16x64xf32>
    %217 = vector.broadcast %198 : vector<1x64xf32> to vector<16x64xf32>
    %218 = arith.mulf %216, %217 : vector<16x64xf32>
    %219 = vector.broadcast %200 : vector<1x64xf32> to vector<16x64xf32>
    %220 = arith.addf %218, %219 : vector<16x64xf32>
    %c0_106 = arith.constant 0 : index
    %c0_107 = arith.constant 0 : index
    %221 = vector.load %arg14[%c0_106, %c0_107] : memref<16x64xf32, #tpu.memory_space<vmem>>, vector<16x64xf32>
    tpu.vector_store %arg14[%c0_106, %c0_107], %220 {strides = array<i32>} : memref<16x64xf32, #tpu.memory_space<vmem>>, vector<16x64xf32>,
    return
  }
  func.func @transform_0(%arg0: i32) -> (i32, i32) {
    %c0_i32 = arith.constant 0 : i32
    %c0_i32_0 = arith.constant 0 : i32
    %c0_i32_1 = arith.constant 0 : i32
    return %c0_i32, %c0_i32_0 : i32, i32
  }
  func.func @transform_1(%arg0: i32) -> (i32, i32, i32) {
    %c0_i32 = arith.constant 0 : i32
    %c0_i32_0 = arith.constant 0 : i32
    %c0_i32_1 = arith.constant 0 : i32
    return %arg0, %c0_i32, %c0_i32_0 : i32, i32, i32
  }
  func.func @transform_2(%arg0: i32) -> (i32, i32, i32) {
    %c0_i32 = arith.constant 0 : i32
    %c0_i32_0 = arith.constant 0 : i32
    %c0_i32_1 = arith.constant 0 : i32
    return %arg0, %c0_i32, %c0_i32_0 : i32, i32, i32
  }
  func.func @transform_3(%arg0: i32) -> (i32, i32, i32) {
    %c0_i32 = arith.constant 0 : i32
    %c0_i32_0 = arith.constant 0 : i32
    %c0_i32_1 = arith.constant 0 : i32
    return %arg0, %c0_i32, %c0_i32_0 : i32, i32, i32
  }
  func.func @transform_4(%arg0: i32) -> (i32, i32, i32) {
    %c0_i32 = arith.constant 0 : i32
    %c0_i32_0 = arith.constant 0 : i32
    %c0_i32_1 = arith.constant 0 : i32
    return %arg0, %c0_i32, %c0_i32_0 : i32, i32, i32
  }
  func.func @transform_5(%arg0: i32) -> (i32, i32, i32) {
    %c0_i32 = arith.constant 0 : i32
    %c0_i32_0 = arith.constant 0 : i32
    %c0_i32_1 = arith.constant 0 : i32
    return %arg0, %c0_i32, %c0_i32_0 : i32, i32, i32
  }
  func.func @transform_6(%arg0: i32) -> (i32, i32, i32) {
    %c0_i32 = arith.constant 0 : i32
    %c0_i32_0 = arith.constant 0 : i32
    %c0_i32_1 = arith.constant 0 : i32
    return %arg0, %c0_i32, %c0_i32_0 : i32, i32, i32
  }
  func.func @transform_7(%arg0: i32) -> (i32, i32, i32) {
    %c0_i32 = arith.constant 0 : i32
    %c0_i32_0 = arith.constant 0 : i32
    %c0_i32_1 = arith.constant 0 : i32
    return %arg0, %c0_i32, %c0_i32_0 : i32, i32, i32
  }
  func.func @transform_8(%arg0: i32) -> (i32, i32, i32) {
    %c0_i32 = arith.constant 0 : i32
    %c0_i32_0 = arith.constant 0 : i32
    %c0_i32_1 = arith.constant 0 : i32
    return %arg0, %c0_i32, %c0_i32_0 : i32, i32, i32
  }
  func.func @transform_9(%arg0: i32) -> (i32, i32, i32) {
    %c0_i32 = arith.constant 0 : i32
    %c0_i32_0 = arith.constant 0 : i32
    %c0_i32_1 = arith.constant 0 : i32
    return %arg0, %c0_i32, %c0_i32_0 : i32, i32, i32
  }
  func.func @transform_10(%arg0: i32) -> (i32, i32, i32) {
    %c0_i32 = arith.constant 0 : i32
    %c0_i32_0 = arith.constant 0 : i32
    %c0_i32_1 = arith.constant 0 : i32
    return %arg0, %c0_i32, %c0_i32_0 : i32, i32, i32
  }
  func.func @transform_11(%arg0: i32) -> (i32, i32, i32) {
    %c0_i32 = arith.constant 0 : i32
    %c0_i32_0 = arith.constant 0 : i32
    %c0_i32_1 = arith.constant 0 : i32
    return %arg0, %c0_i32, %c0_i32_0 : i32, i32, i32
  }
  func.func @transform_12(%arg0: i32) -> (i32, i32, i32) {
    %c0_i32 = arith.constant 0 : i32
    %c0_i32_0 = arith.constant 0 : i32
    %c0_i32_1 = arith.constant 0 : i32
    return %arg0, %c0_i32, %c0_i32_0 : i32, i32, i32
  }
  func.func @transform_13(%arg0: i32) -> (i32, i32) {
    %c0_i32 = arith.constant 0 : i32
    %c0_i32_0 = arith.constant 0 : i32
    %c0_i32_1 = arith.constant 0 : i32
    return %c0_i32, %c0_i32_0 : i32, i32
  }
}

</mosaic_0001>

<llo_original>
// kernel: generator_forward.1
$region0: #{generator_forward.1}
  #allocation0 [shape = 'u32[]', space=smem, size = 0x4, offset = 0x4, fixed_abs, tag = 'smem constant byte address 0x4 - core index']
  #allocation1 [shape = 'u32[72,128]{1,0:T(1,128)}', space=vmem, size = 0x9000, scoped, tag = 'internal scratch']
  #allocation2 [shape = 'f32[16,64]{1,0:T(8,128)}', space=vmem, size = 0x2000, scoped, tag = 'scratch operand']
  %s0 = inlined_call_operand.vmem [shape: f32[16,64], index: 0, kind: input, shape index: {}]
  %s1 = inlined_call_operand.vmem [shape: f32[6,64,192], index: 1, kind: input, shape index: {}]
  %s2 = inlined_call_operand.vmem [shape: f32[6,1,192], index: 2, kind: input, shape index: {}]
  %s3 = inlined_call_operand.vmem [shape: f32[6,64,64], index: 3, kind: input, shape index: {}]
  %s4 = inlined_call_operand.vmem [shape: f32[6,1,64], index: 4, kind: input, shape index: {}]
  %s5 = inlined_call_operand.hbm [shape: f32[6,64,128], index: 5, kind: input, shape index: {}]
  %s6 = inlined_call_operand.vmem [shape: f32[6,1,128], index: 6, kind: input, shape index: {}]
  %s7 = inlined_call_operand.vmem [shape: f32[6,128,64], index: 7, kind: input, shape index: {}]
  %s8 = inlined_call_operand.vmem [shape: f32[6,1,64], index: 8, kind: input, shape index: {}]
  %s9 = inlined_call_operand.vmem [shape: f32[6,1,64], index: 9, kind: input, shape index: {}]
  %s10 = inlined_call_operand.vmem [shape: f32[6,1,64], index: 10, kind: input, shape index: {}]
  %s11 = inlined_call_operand.vmem [shape: f32[6,1,64], index: 11, kind: input, shape index: {}]
  %s12 = inlined_call_operand.vmem [shape: f32[6,1,64], index: 12, kind: input, shape index: {}]
  %s13 = inlined_call_operand.vmem [shape: f32[16,64], index: 13, kind: output, shape index: {}]
  %s14 = sld [smem:[#allocation0]]
  $region93: #{generator_forward.1} parent=0
    _
  %s16 = ssub.s32 1, %s14
  %s17 = scalar_select 0, %s16, %s14
  $region1: #{generator_forward.1} parent=0
    #allocation3 [shape = 'u8[65536]{0}', space=vmem, size = 0x10000, scoped, tag = 'input window, operand 5']
    #allocation4 [shape = 's32[2]{0}', space=sflag, size = 0x8, scoped, tag = 'scoped memory for generator_forward.1']
    %18 = vsyncpa [#allocation4], 0
    %s19 = scalar_lea.sflag [#allocation4], 1
    %20 = vsyncpa %s19, 0
    loop: start=0, step=1, limit=8
    $region2: #{generator_forward.1} parent=1 // loop_pre_header
      _
    $region3: #{generator_forward.1} parent=1 // loop_header
      %s22 = sphi 0, %s26
      %p23 = scmp.ge.s32.totalorder %s22, 8
      %s30 = sphi 0, %s30
      %s32 = sphi 0, %s30
      %s33 = sphi 0, %s32
      %s47 = sphi 0, %s33
      %s53 = sphi 0, %s55
      %s56 = sphi 0, %s53
      %s57 = sphi 0, %s56
      %s73 = sphi 0, %s57
      %s79 = sphi 0, %s81
      %s82 = sphi 0, %s79
      %s83 = sphi 0, %s82
      %s99 = sphi 0, %s83
      %s105 = sphi 0, %s107
      %s108 = sphi 0, %s105
      %s109 = sphi 0, %s108
      %s125 = sphi 0, %s109
      %s131 = sphi 0, %s133
      %s134 = sphi 0, %s131
      %s135 = sphi 0, %s134
      %s151 = sphi 0, %s135
      %s157 = sphi 0, %s159
      %s160 = sphi 0, %s157
      %s161 = sphi 0, %s160
      %s177 = sphi 0, %s161
      %s183 = sphi 0, %s185
      %s186 = sphi 0, %s183
      %s187 = sphi 0, %s186
      %s203 = sphi 0, %s187
      %s209 = sphi 0, %s211
      %s212 = sphi 0, %s209
      %s213 = sphi 0, %s212
      %s229 = sphi 0, %s213
      %s235 = sphi 0, %s237
      %s238 = sphi 0, %s235
      %s239 = sphi 0, %s238
      %s255 = sphi 0, %s239
      %s261 = sphi 0, %s263
      %s264 = sphi 0, %s261
      %s265 = sphi 0, %s264
      %s281 = sphi 0, %s265
      %s287 = sphi 0, %s289
      %s290 = sphi 0, %s287
      %s291 = sphi 0, %s290
      %s307 = sphi 0, %s291
      %s313 = sphi 0, %s315
      %s316 = sphi 0, %s313
      %s317 = sphi 0, %s316
      %s333 = sphi 0, %s317
      %s339 = sphi 0, %s341
      %s342 = sphi 0, %s339
      %s343 = sphi 0, %s342
      %s359 = sphi 0, %s343
      %s363 = sphi 0, %s363
      %s365 = sphi 0, %s363
      %s366 = sphi 0, %s365
      %s380 = sphi 0, %s366
    $region4: #{generator_forward.1} parent=1 // loop_header_branch
      %25 = sbr.rel (%p23) target = $region8
    $region5: #{generator_forward.1} parent=1 // loop_body
      %s27 = ssub.s32 %s22, 1
      %s28 = ssub.s32 %s22, 2
      %s29 = sadd.s32 %s22, 1
      %s31 = sadd.s32 %s30, 1
      %p34 = scmp.eq.s32.totalorder %s22, 5
      %p35 = scmp.ne.s32.totalorder %s30, %s32
      %p36 = scmp.eq.s32.totalorder %s22, 0
      %p37 = por %p35, %p36
      %p38 = scmp.ne.s32.totalorder %s30, %s32
      %p39 = scmp.eq.s32.totalorder %s27, 5
      %p40 = por %p38, %p39
      %p41 = scmp.ne.s32.totalorder %s32, %s33
      %p42 = scmp.eq.s32.totalorder %s27, 0
      %p43 = por %p41, %p42
      %p44 = scmp.ne.s32.totalorder %s32, %s33
      %p45 = scmp.eq.s32.totalorder %s28, 5
      %p46 = por %p44, %p45
      %p48 = scmp.ne.s32.totalorder %s33, %s47
      %p49 = scmp.eq.s32.totalorder %s28, 0
      %p50 = por %p48, %p49
      %s51 = ssub.s32 %s22, %s29
      %p52 = scmp.eq.s32.totalorder %s51, 0
      %s54 = sadd.s32 %s53, 1
      %s55 = scalar_select %p52, %s53, %s54
      %p58 = pneg %p52
      %p59 = scmp.eq.s32.totalorder %s22, 5
      %p60 = por %p58, %p59
      %p61 = scmp.ne.s32.totalorder %s53, %s56
      %p62 = scmp.eq.s32.totalorder %s22, 0
      %p63 = por %p61, %p62
      %p64 = scmp.ne.s32.totalorder %s53, %s56
      %p65 = scmp.eq.s32.totalorder %s27, 5
      %p66 = por %p64, %p65
      %p67 = scmp.ne.s32.totalorder %s56, %s57
      %p68 = scmp.eq.s32.totalorder %s27, 0
      %p69 = por %p67, %p68
      %p70 = scmp.ne.s32.totalorder %s56, %s57
      %p71 = scmp.eq.s32.totalorder %s28, 5
      %p72 = por %p70, %p71
      %p74 = scmp.ne.s32.totalorder %s57, %s73
      %p75 = scmp.eq.s32.totalorder %s28, 0
      %p76 = por %p74, %p75
      %s77 = ssub.s32 %s22, %s29
      %p78 = scmp.eq.s32.totalorder %s77, 0
      %s80 = sadd.s32 %s79, 1
      %s81 = scalar_select %p78, %s79, %s80
      %p84 = pneg %p78
      %p85 = scmp.eq.s32.totalorder %s22, 5
      %p86 = por %p84, %p85
      %p87 = scmp.ne.s32.totalorder %s79, %s82
      %p88 = scmp.eq.s32.totalorder %s22, 0
      %p89 = por %p87, %p88
      %p90 = scmp.ne.s32.totalorder %s79, %s82
      %p91 = scmp.eq.s32.totalorder %s27, 5
      %p92 = por %p90, %p91
      %p93 = scmp.ne.s32.totalorder %s82, %s83
      %p94 = scmp.eq.s32.totalorder %s27, 0
      %p95 = por %p93, %p94
      %p96 = scmp.ne.s32.totalorder %s82, %s83
      %p97 = scmp.eq.s32.totalorder %s28, 5
      %p98 = por %p96, %p97
      %p100 = scmp.ne.s32.totalorder %s83, %s99
      %p101 = scmp.eq.s32.totalorder %s28, 0
      %p102 = por %p100, %p101
      %s103 = ssub.s32 %s22, %s29
      %p104 = scmp.eq.s32.totalorder %s103, 0
      %s106 = sadd.s32 %s105, 1
      %s107 = scalar_select %p104, %s105, %s106
      %p110 = pneg %p104
      %p111 = scmp.eq.s32.totalorder %s22, 5
      %p112 = por %p110, %p111
      %p113 = scmp.ne.s32.totalorder %s105, %s108
      %p114 = scmp.eq.s32.totalorder %s22, 0
      %p115 = por %p113, %p114
      %p116 = scmp.ne.s32.totalorder %s105, %s108
      %p117 = scmp.eq.s32.totalorder %s27, 5
      %p118 = por %p116, %p117
      %p119 = scmp.ne.s32.totalorder %s108, %s109
      %p120 = scmp.eq.s32.totalorder %s27, 0
      %p121 = por %p119, %p120
      %p122 = scmp.ne.s32.totalorder %s108, %s109
      %p123 = scmp.eq.s32.totalorder %s28, 5
      %p124 = por %p122, %p123
      %p126 = scmp.ne.s32.totalorder %s109, %s125
      %p127 = scmp.eq.s32.totalorder %s28, 0
      %p128 = por %p126, %p127
      %s129 = ssub.s32 %s22, %s29
      %p130 = scmp.eq.s32.totalorder %s129, 0
      %s132 = sadd.s32 %s131, 1
      %s133 = scalar_select %p130, %s131, %s132
      %p136 = pneg %p130
      %p137 = scmp.eq.s32.totalorder %s22, 5
      %p138 = por %p136, %p137
      %p139 = scmp.ne.s32.totalorder %s131, %s134
      %p140 = scmp.eq.s32.totalorder %s22, 0
      %p141 = por %p139, %p140
      %p142 = scmp.ne.s32.totalorder %s131, %s134
      %p143 = scmp.eq.s32.totalorder %s27, 5
      %p144 = por %p142, %p143
      %p145 = scmp.ne.s32.totalorder %s134, %s135
      %p146 = scmp.eq.s32.totalorder %s27, 0
      %p147 = por %p145, %p146
      %p148 = scmp.ne.s32.totalorder %s134, %s135
      %p149 = scmp.eq.s32.totalorder %s28, 5
      %p150 = por %p148, %p149
      %p152 = scmp.ne.s32.totalorder %s135, %s151
      %p153 = scmp.eq.s32.totalorder %s28, 0
      %p154 = por %p152, %p153
      %s155 = ssub.s32 %s22, %s29
      %p156 = scmp.eq.s32.totalorder %s155, 0
      %s158 = sadd.s32 %s157, 1
      %s159 = scalar_select %p156, %s157, %s158
      %p162 = pneg %p156
      %p163 = scmp.eq.s32.totalorder %s22, 5
      %p164 = por %p162, %p163
      %p165 = scmp.ne.s32.totalorder %s157, %s160
      %p166 = scmp.eq.s32.totalorder %s22, 0
      %p167 = por %p165, %p166
      %p168 = scmp.ne.s32.totalorder %s157, %s160
      %p169 = scmp.eq.s32.totalorder %s27, 5
      %p170 = por %p168, %p169
      %p171 = scmp.ne.s32.totalorder %s160, %s161
      %p172 = scmp.eq.s32.totalorder %s27, 0
      %p173 = por %p171, %p172
      %p174 = scmp.ne.s32.totalorder %s160, %s161
      %p175 = scmp.eq.s32.totalorder %s28, 5
      %p176 = por %p174, %p175
      %p178 = scmp.ne.s32.totalorder %s161, %s177
      %p179 = scmp.eq.s32.totalorder %s28, 0
      %p180 = por %p178, %p179
      %s181 = ssub.s32 %s22, %s29
      %p182 = scmp.eq.s32.totalorder %s181, 0
      %s184 = sadd.s32 %s183, 1
      %s185 = scalar_select %p182, %s183, %s184
      %p188 = pneg %p182
      %p189 = scmp.eq.s32.totalorder %s22, 5
      %p190 = por %p188, %p189
      %p191 = scmp.ne.s32.totalorder %s183, %s186
      %p192 = scmp.eq.s32.totalorder %s22, 0
      %p193 = por %p191, %p192
      %p194 = scmp.ne.s32.totalorder %s183, %s186
      %p195 = scmp.eq.s32.totalorder %s27, 5
      %p196 = por %p194, %p195
      %p197 = scmp.ne.s32.totalorder %s186, %s187
      %p198 = scmp.eq.s32.totalorder %s27, 0
      %p199 = por %p197, %p198
      %p200 = scmp.ne.s32.totalorder %s186, %s187
      %p201 = scmp.eq.s32.totalorder %s28, 5
      %p202 = por %p200, %p201
      %p204 = scmp.ne.s32.totalorder %s187, %s203
      %p205 = scmp.eq.s32.totalorder %s28, 0
      %p206 = por %p204, %p205
      %s207 = ssub.s32 %s22, %s29
      %p208 = scmp.eq.s32.totalorder %s207, 0
      %s210 = sadd.s32 %s209, 1
      %s211 = scalar_select %p208, %s209, %s210
      %p214 = pneg %p208
      %p215 = scmp.eq.s32.totalorder %s22, 5
      %p216 = por %p214, %p215
      %p217 = scmp.ne.s32.totalorder %s209, %s212
      %p218 = scmp.eq.s32.totalorder %s22, 0
      %p219 = por %p217, %p218
      %p220 = scmp.ne.s32.totalorder %s209, %s212
      %p221 = scmp.eq.s32.totalorder %s27, 5
      %p222 = por %p220, %p221
      %p223 = scmp.ne.s32.totalorder %s212, %s213
      %p224 = scmp.eq.s32.totalorder %s27, 0
      %p225 = por %p223, %p224
      %p226 = scmp.ne.s32.totalorder %s212, %s213
      %p227 = scmp.eq.s32.totalorder %s28, 5
      %p228 = por %p226, %p227
      %p230 = scmp.ne.s32.totalorder %s213, %s229
      %p231 = scmp.eq.s32.totalorder %s28, 0
      %p232 = por %p230, %p231
      %s233 = ssub.s32 %s22, %s29
      %p234 = scmp.eq.s32.totalorder %s233, 0
      %s236 = sadd.s32 %s235, 1
      %s237 = scalar_select %p234, %s235, %s236
      %p240 = pneg %p234
      %p241 = scmp.eq.s32.totalorder %s22, 5
      %p242 = por %p240, %p241
      %p243 = scmp.ne.s32.totalorder %s235, %s238
      %p244 = scmp.eq.s32.totalorder %s22, 0
      %p245 = por %p243, %p244
      %p246 = scmp.ne.s32.totalorder %s235, %s238
      %p247 = scmp.eq.s32.totalorder %s27, 5
      %p248 = por %p246, %p247
      %p249 = scmp.ne.s32.totalorder %s238, %s239
      %p250 = scmp.eq.s32.totalorder %s27, 0
      %p251 = por %p249, %p250
      %p252 = scmp.ne.s32.totalorder %s238, %s239
      %p253 = scmp.eq.s32.totalorder %s28, 5
      %p254 = por %p252, %p253
      %p256 = scmp.ne.s32.totalorder %s239, %s255
      %p257 = scmp.eq.s32.totalorder %s28, 0
      %p258 = por %p256, %p257
      %s259 = ssub.s32 %s22, %s29
      %p260 = scmp.eq.s32.totalorder %s259, 0
      %s262 = sadd.s32 %s261, 1
      %s263 = scalar_select %p260, %s261, %s262
      %p266 = pneg %p260
      %p267 = scmp.eq.s32.totalorder %s22, 5
      %p268 = por %p266, %p267
      %p269 = scmp.ne.s32.totalorder %s261, %s264
      %p270 = scmp.eq.s32.totalorder %s22, 0
      %p271 = por %p269, %p270
      %p272 = scmp.ne.s32.totalorder %s261, %s264
      %p273 = scmp.eq.s32.totalorder %s27, 5
      %p274 = por %p272, %p273
      %p275 = scmp.ne.s32.totalorder %s264, %s265
      %p276 = scmp.eq.s32.totalorder %s27, 0
      %p277 = por %p275, %p276
      %p278 = scmp.ne.s32.totalorder %s264, %s265
      %p279 = scmp.eq.s32.totalorder %s28, 5
      %p280 = por %p278, %p279
      %p282 = scmp.ne.s32.totalorder %s265, %s281
      %p283 = scmp.eq.s32.totalorder %s28, 0
      %p284 = por %p282, %p283
      %s285 = ssub.s32 %s22, %s29
      %p286 = scmp.eq.s32.totalorder %s285, 0
      %s288 = sadd.s32 %s287, 1
      %s289 = scalar_select %p286, %s287, %s288
      %p292 = pneg %p286
      %p293 = scmp.eq.s32.totalorder %s22, 5
      %p294 = por %p292, %p293
      %p295 = scmp.ne.s32.totalorder %s287, %s290
      %p296 = scmp.eq.s32.totalorder %s22, 0
      %p297 = por %p295, %p296
      %p298 = scmp.ne.s32.totalorder %s287, %s290
      %p299 = scmp.eq.s32.totalorder %s27, 5
      %p300 = por %p298, %p299
      %p301 = scmp.ne.s32.totalorder %s290, %s291
      %p302 = scmp.eq.s32.totalorder %s27, 0
      %p303 = por %p301, %p302
      %p304 = scmp.ne.s32.totalorder %s290, %s291
      %p305 = scmp.eq.s32.totalorder %s28, 5
      %p306 = por %p304, %p305
      %p308 = scmp.ne.s32.totalorder %s291, %s307
      %p309 = scmp.eq.s32.totalorder %s28, 0
      %p310 = por %p308, %p309
      %s311 = ssub.s32 %s22, %s29
      %p312 = scmp.eq.s32.totalorder %s311, 0
      %s314 = sadd.s32 %s313, 1
      %s315 = scalar_select %p312, %s313, %s314
      %p318 = pneg %p312
      %p319 = scmp.eq.s32.totalorder %s22, 5
      %p320 = por %p318, %p319
      %p321 = scmp.ne.s32.totalorder %s313, %s316
      %p322 = scmp.eq.s32.totalorder %s22, 0
      %p323 = por %p321, %p322
      %p324 = scmp.ne.s32.totalorder %s313, %s316
      %p325 = scmp.eq.s32.totalorder %s27, 5
      %p326 = por %p324, %p325
      %p327 = scmp.ne.s32.totalorder %s316, %s317
      %p328 = scmp.eq.s32.totalorder %s27, 0
      %p329 = por %p327, %p328
      %p330 = scmp.ne.s32.totalorder %s316, %s317
      %p331 = scmp.eq.s32.totalorder %s28, 5
      %p332 = por %p330, %p331
      %p334 = scmp.ne.s32.totalorder %s317, %s333
      %p335 = scmp.eq.s32.totalorder %s28, 0
      %p336 = por %p334, %p335
      %s337 = ssub.s32 %s22, %s29
      %p338 = scmp.eq.s32.totalorder %s337, 0
      %s340 = sadd.s32 %s339, 1
      %s341 = scalar_select %p338, %s339, %s340
      %p344 = pneg %p338
      %p345 = scmp.eq.s32.totalorder %s22, 5
      %p346 = por %p344, %p345
      %p347 = scmp.ne.s32.totalorder %s339, %s342
      %p348 = scmp.eq.s32.totalorder %s22, 0
      %p349 = por %p347, %p348
      %p350 = scmp.ne.s32.totalorder %s339, %s342
      %p351 = scmp.eq.s32.totalorder %s27, 5
      %p352 = por %p350, %p351
      %p353 = scmp.ne.s32.totalorder %s342, %s343
      %p354 = scmp.eq.s32.totalorder %s27, 0
      %p355 = por %p353, %p354
      %p356 = scmp.ne.s32.totalorder %s342, %s343
      %p357 = scmp.eq.s32.totalorder %s28, 5
      %p358 = por %p356, %p357
      %p360 = scmp.ne.s32.totalorder %s343, %s359
      %p361 = scmp.eq.s32.totalorder %s28, 0
      %p362 = por %p360, %p361
      %s364 = sadd.s32 %s363, 1
      %p367 = scmp.eq.s32.totalorder %s22, 5
      %p368 = scmp.ne.s32.totalorder %s363, %s365
      %p369 = scmp.eq.s32.totalorder %s22, 0
      %p370 = por %p368, %p369
      %p371 = scmp.ne.s32.totalorder %s363, %s365
      %p372 = scmp.eq.s32.totalorder %s27, 5
      %p373 = por %p371, %p372
      %p374 = scmp.ne.s32.totalorder %s365, %s366
      %p375 = scmp.eq.s32.totalorder %s27, 0
      %p376 = por %p374, %p375
      %p377 = scmp.ne.s32.totalorder %s365, %s366
      %p378 = scmp.eq.s32.totalorder %s28, 5
      %p379 = por %p377, %p378
      %p381 = scmp.ne.s32.totalorder %s366, %s380
      %p382 = scmp.eq.s32.totalorder %s28, 0
      %p383 = por %p381, %p382
      %p384 = scmp.le.s32.totalorder 1, %s22
      %p385 = scmp.lt.s32.totalorder %s22, 7
      %p386 = pnand %p384, %p385
      %p387 = pneg %p386
      // Predicated region
      $region9: #{generator_forward.1} parent=5 // pred_check
        _
      $region10: #{generator_forward.1} parent=5 // pred_check_branch
        %389 = sbr.rel (%p386) target = $region12
      $region11: #{generator_forward.1} parent=5 // pred_region
        %s390 = ssub.s32 %s22, 1
        // Predicated region
        $region13: #{generator_forward.1} parent=11 // pred_check
          %p391 = pneg %p43
        $region14: #{generator_forward.1} parent=11 // pred_check_branch
          %393 = sbr.rel (%p391) target = $region16
        $region15: #{generator_forward.1} parent=11 // pred_region
          _
        $region16: #{generator_forward.1} parent=11 // pred_fallthru
          _
      $region12: #{generator_forward.1} parent=5 // pred_fallthru
        _
      %p394 = scmp.lt.s32.totalorder %s22, 6
      // Predicated region
      $region17: #{generator_forward.1} parent=5 // pred_check
        %p395 = pneg %p394
      $region18: #{generator_forward.1} parent=5 // pred_check_branch
        %397 = sbr.rel (%p395) target = $region20
      $region19: #{generator_forward.1} parent=5 // pred_region
        // Predicated region
        $region21: #{generator_forward.1} parent=19 // pred_check
          %p398 = pneg %p63
        $region22: #{generator_forward.1} parent=19 // pred_check_branch
          %400 = sbr.rel (%p398) target = $region24
        $region23: #{generator_forward.1} parent=19 // pred_region
          %p401 = scmp.lt.s32.totalorder %s22, 5
          %s402 = scalar_select %p401, %s22, 5
          %s403 = smul.addr %s402, 16
          %s404 = smul.addr %s403, 8
          %s405 = scalar_lea.vmem %s1, %s404
        $region24: #{generator_forward.1} parent=19 // pred_fallthru
          _
        // Predicated region
        $region25: #{generator_forward.1} parent=19 // pred_check
          %p406 = pneg %p89
        $region26: #{generator_forward.1} parent=19 // pred_check_branch
          %408 = sbr.rel (%p406) target = $region28
        $region27: #{generator_forward.1} parent=19 // pred_region
          %p409 = scmp.lt.s32.totalorder %s22, 5
          %s410 = scalar_select %p409, %s22, 5
          %s411 = smul.addr %s410, 2
          %s412 = scalar_lea.vmem %s2, %s411
        $region28: #{generator_forward.1} parent=19 // pred_fallthru
          _
        // Predicated region
        $region29: #{generator_forward.1} parent=19 // pred_check
          %p413 = pneg %p115
        $region30: #{generator_forward.1} parent=19 // pred_check_branch
          %415 = sbr.rel (%p413) target = $region32
        $region31: #{generator_forward.1} parent=19 // pred_region
          %p416 = scmp.lt.s32.totalorder %s22, 5
          %s417 = scalar_select %p416, %s22, 5
          %s418 = smul.addr %s417, 8
          %s419 = smul.addr %s418, 8
          %s420 = scalar_lea.vmem %s3, %s419
        $region32: #{generator_forward.1} parent=19 // pred_fallthru
          _
        // Predicated region
        $region33: #{generator_forward.1} parent=19 // pred_check
          %p421 = pneg %p141
        $region34: #{generator_forward.1} parent=19 // pred_check_branch
          %423 = sbr.rel (%p421) target = $region36
        $region35: #{generator_forward.1} parent=19 // pred_region
          %p424 = scmp.lt.s32.totalorder %s22, 5
          %s425 = scalar_select %p424, %s22, 5
          %s426 = scalar_lea.vmem %s4, %s425
        $region36: #{generator_forward.1} parent=19 // pred_fallthru
          _
        // Predicated region
        $region37: #{generator_forward.1} parent=19 // pred_check
          %p427 = pneg %p167
        $region38: #{generator_forward.1} parent=19 // pred_check_branch
          %429 = sbr.rel (%p427) target = $region40
        $region39: #{generator_forward.1} parent=19 // pred_region
          %s430 = sand.u32 %s157, 1
          %s431 = scalar_lea.sflag [#allocation4], %s430
          %s432 = sand.u32 %s157, 1
          %s433 = smul.addr %s432, 64
          %s434 = scalar_lea.vmem [#allocation3], %s433
          %436 = vsyncadd %s431, 0
          %s437 = smul.addr %s22, 8
          %s438 = smul.addr %s437, 8
          %s439 = scalar_lea.hbm %s5, %s438
          %s440 = sshll.u32 %s439, 4
          %s441 = int_to_ptr.hbm [resolvable:$true] %s440
          %s442 = sshll.u32 %s434, 4
          %s443 = int_to_ptr.vmem [resolvable:$true] %s442
          %448 = dma.hbm_to_vmem [thread:$0]  %s441, 1024, %s443, %s431, 128, 128, 8
        $region40: #{generator_forward.1} parent=19 // pred_fallthru
          _
        // Predicated region
        $region41: #{generator_forward.1} parent=19 // pred_check
          %p449 = pneg %p193
        $region42: #{generator_forward.1} parent=19 // pred_check_branch
          %451 = sbr.rel (%p449) target = $region44
        $region43: #{generator_forward.1} parent=19 // pred_region
          %p452 = scmp.lt.s32.totalorder %s22, 5
          %s453 = scalar_select %p452, %s22, 5
          %s454 = scalar_lea.vmem %s6, %s453
        $region44: #{generator_forward.1} parent=19 // pred_fallthru
          _
        // Predicated region
        $region45: #{generator_forward.1} parent=19 // pred_check
          %p455 = pneg %p219
        $region46: #{generator_forward.1} parent=19 // pred_check_branch
          %457 = sbr.rel (%p455) target = $region48
        $region47: #{generator_forward.1} parent=19 // pred_region
          %p458 = scmp.lt.s32.totalorder %s22, 5
          %s459 = scalar_select %p458, %s22, 5
          %s460 = smul.addr %s459, 16
          %s461 = smul.addr %s460, 8
          %s462 = scalar_lea.vmem %s7, %s461
        $region48: #{generator_forward.1} parent=19 // pred_fallthru
          _
        // Predicated region
        $region49: #{generator_forward.1} parent=19 // pred_check
          %p463 = pneg %p245
        $region50: #{generator_forward.1} parent=19 // pred_check_branch
          %465 = sbr.rel (%p463) target = $region52
        $region51: #{generator_forward.1} parent=19 // pred_region
          %p466 = scmp.lt.s32.totalorder %s22, 5
          %s467 = scalar_select %p466, %s22, 5
          %s468 = scalar_lea.vmem %s8, %s467
        $region52: #{generator_forward.1} parent=19 // pred_fallthru
          _
        // Predicated region
        $region53: #{generator_forward.1} parent=19 // pred_check
          %p469 = pneg %p271
        $region54: #{generator_forward.1} parent=19 // pred_check_branch
          %471 = sbr.rel (%p469) target = $region56
        $region55: #{generator_forward.1} parent=19 // pred_region
          %p472 = scmp.lt.s32.totalorder %s22, 5
          %s473 = scalar_select %p472, %s22, 5
          %s474 = scalar_lea.vmem %s9, %s473
        $region56: #{generator_forward.1} parent=19 // pred_fallthru
          _
        // Predicated region
        $region57: #{generator_forward.1} parent=19 // pred_check
          %p475 = pneg %p297
        $region58: #{generator_forward.1} parent=19 // pred_check_branch
          %477 = sbr.rel (%p475) target = $region60
        $region59: #{generator_forward.1} parent=19 // pred_region
          %p478 = scmp.lt.s32.totalorder %s22, 5
          %s479 = scalar_select %p478, %s22, 5
          %s480 = scalar_lea.vmem %s10, %s479
        $region60: #{generator_forward.1} parent=19 // pred_fallthru
          _
        // Predicated region
        $region61: #{generator_forward.1} parent=19 // pred_check
          %p481 = pneg %p323
        $region62: #{generator_forward.1} parent=19 // pred_check_branch
          %483 = sbr.rel (%p481) target = $region64
        $region63: #{generator_forward.1} parent=19 // pred_region
          %p484 = scmp.lt.s32.totalorder %s22, 5
          %s485 = scalar_select %p484, %s22, 5
          %s486 = scalar_lea.vmem %s11, %s485
        $region64: #{generator_forward.1} parent=19 // pred_fallthru
          _
        // Predicated region
        $region65: #{generator_forward.1} parent=19 // pred_check
          %p487 = pneg %p349
        $region66: #{generator_forward.1} parent=19 // pred_check_branch
          %489 = sbr.rel (%p487) target = $region68
        $region67: #{generator_forward.1} parent=19 // pred_region
          %p490 = scmp.lt.s32.totalorder %s22, 5
          %s491 = scalar_select %p490, %s22, 5
          %s492 = scalar_lea.vmem %s12, %s491
        $region68: #{generator_forward.1} parent=19 // pred_fallthru
          _
      $region20: #{generator_forward.1} parent=5 // pred_fallthru
        _
      %p493 = scmp.le.s32.totalorder 1, %s22
      %p494 = scmp.lt.s32.totalorder %s22, 7
      %p495 = pnand %p493, %p494
      %p496 = pneg %p495
      // Predicated region
      $region69: #{generator_forward.1} parent=5 // pred_check
        _
      $region70: #{generator_forward.1} parent=5 // pred_check_branch
        %498 = sbr.rel (%p495) target = $region72
      $region71: #{generator_forward.1} parent=5 // pred_region
        %s499 = ssub.s32 %s22, 1
        %s500 = sand.u32 %s160, 1
        %s501 = scalar_lea.sflag [#allocation4], %s500
        %s502 = sand.u32 %s160, 1
        %s503 = smul.addr %s502, 64
        %s504 = scalar_lea.vmem [#allocation3], %s503
        // Predicated region
        $region73: #{generator_forward.1} parent=71 // pred_check
          %p505 = pneg %p173
        $region74: #{generator_forward.1} parent=71 // pred_check_branch
          %507 = sbr.rel (%p505) target = $region76
        $region75: #{generator_forward.1} parent=71 // pred_region
          %509 = dma.done %s501, 1024
        $region76: #{generator_forward.1} parent=71 // pred_fallthru
          _
        %p510 = pneg %p43
        %p511 = pneg %p40
        %p512 = scmp.lt.s32.totalorder %s27, 5
        %s513 = scalar_select %p512, %s27, 5
        %s514 = smul.addr %s513, 16
        %s515 = smul.addr %s514, 8
        %s516 = scalar_lea.vmem %s1, %s515
        %p517 = pneg %p69
        %p518 = pneg %p66
        %p519 = scmp.lt.s32.totalorder %s27, 5
        %s520 = scalar_select %p519, %s27, 5
        %s521 = smul.addr %s520, 2
        %s522 = scalar_lea.vmem %s2, %s521
        %p523 = pneg %p95
        %p524 = pneg %p92
        %p525 = scmp.lt.s32.totalorder %s27, 5
        %s526 = scalar_select %p525, %s27, 5
        %s527 = smul.addr %s526, 8
        %s528 = smul.addr %s527, 8
        %s529 = scalar_lea.vmem %s3, %s528
        %p530 = pneg %p121
        %p531 = pneg %p118
        %p532 = scmp.lt.s32.totalorder %s27, 5
        %s533 = scalar_select %p532, %s27, 5
        %s534 = scalar_lea.vmem %s4, %s533
        %p535 = pneg %p147
        %p536 = pneg %p144
        %s537 = sand.u32 %s160, 1
        %s538 = scalar_lea.sflag [#allocation4], %s537
        %s539 = sand.u32 %s160, 1
        %s540 = smul.addr %s539, 64
        %s541 = scalar_lea.vmem [#allocation3], %s540
        %p542 = pneg %p173
        %p543 = pneg %p170
        %p544 = scmp.lt.s32.totalorder %s27, 5
        %s545 = scalar_select %p544, %s27, 5
        %s546 = scalar_lea.vmem %s6, %s545
        %p547 = pneg %p199
        %p548 = pneg %p196
        %p549 = scmp.lt.s32.totalorder %s27, 5
        %s550 = scalar_select %p549, %s27, 5
        %s551 = smul.addr %s550, 16
        %s552 = smul.addr %s551, 8
        %s553 = scalar_lea.vmem %s7, %s552
        %p554 = pneg %p225
        %p555 = pneg %p222
        %p556 = scmp.lt.s32.totalorder %s27, 5
        %s557 = scalar_select %p556, %s27, 5
        %s558 = scalar_lea.vmem %s8, %s557
        %p559 = pneg %p251
        %p560 = pneg %p248
        %p561 = scmp.lt.s32.totalorder %s27, 5
        %s562 = scalar_select %p561, %s27, 5
        %s563 = scalar_lea.vmem %s9, %s562
        %p564 = pneg %p277
        %p565 = pneg %p274
        %p566 = scmp.lt.s32.totalorder %s27, 5
        %s567 = scalar_select %p566, %s27, 5
        %s568 = scalar_lea.vmem %s10, %s567
        %p569 = pneg %p303
        %p570 = pneg %p300
        %p571 = scmp.lt.s32.totalorder %s27, 5
        %s572 = scalar_select %p571, %s27, 5
        %s573 = scalar_lea.vmem %s11, %s572
        %p574 = pneg %p329
        %p575 = pneg %p326
        %p576 = scmp.lt.s32.totalorder %s27, 5
        %s577 = scalar_select %p576, %s27, 5
        %s578 = scalar_lea.vmem %s12, %s577
        %p579 = pneg %p355
        %p580 = pneg %p352
        %p581 = pneg %p376
        %p582 = pneg %p373
        %p583 = scmp.lt.s32.totalorder %s27, 5
        %s584 = scalar_select %p583, %s27, 5
        %s585 = smul.addr %s584, 16
        %s586 = smul.addr %s585, 8
        %s587 = scalar_lea.vmem %s1, %s586
        %p588 = scmp.lt.s32.totalorder %s27, 5
        %s589 = scalar_select %p588, %s27, 5
        %s590 = smul.addr %s589, 2
        %s591 = scalar_lea.vmem %s2, %s590
        %p592 = scmp.lt.s32.totalorder %s27, 5
        %s593 = scalar_select %p592, %s27, 5
        %s594 = smul.addr %s593, 8
        %s595 = smul.addr %s594, 8
        %s596 = scalar_lea.vmem %s3, %s595
        %p597 = scmp.lt.s32.totalorder %s27, 5
        %s598 = scalar_select %p597, %s27, 5
        %s599 = scalar_lea.vmem %s4, %s598
        %p600 = scmp.lt.s32.totalorder %s27, 5
        %s601 = scalar_select %p600, %s27, 5
        %s602 = scalar_lea.vmem %s6, %s601
        %p603 = scmp.lt.s32.totalorder %s27, 5
        %s604 = scalar_select %p603, %s27, 5
        %s605 = smul.addr %s604, 16
        %s606 = smul.addr %s605, 8
        %s607 = scalar_lea.vmem %s7, %s606
        %p608 = scmp.lt.s32.totalorder %s27, 5
        %s609 = scalar_select %p608, %s27, 5
        %s610 = scalar_lea.vmem %s8, %s609
        %p611 = scmp.lt.s32.totalorder %s27, 5
        %s612 = scalar_select %p611, %s27, 5
        %s613 = scalar_lea.vmem %s9, %s612
        %p614 = scmp.lt.s32.totalorder %s27, 5
        %s615 = scalar_select %p614, %s27, 5
        %s616 = scalar_lea.vmem %s10, %s615
        %p617 = scmp.lt.s32.totalorder %s27, 5
        %s618 = scalar_select %p617, %s27, 5
        %s619 = scalar_lea.vmem %s11, %s618
        %p620 = scmp.lt.s32.totalorder %s27, 5
        %s621 = scalar_select %p620, %s27, 5
        %s622 = scalar_lea.vmem %s12, %s621
        %p623 = scmp.eq.s32.totalorder %s27, 0
        // Predicated region
        $region77: #{generator_forward.1} parent=71 // pred_check
          %p624 = pneg %p623
        $region78: #{generator_forward.1} parent=71 // pred_check_branch
          %626 = sbr.rel (%p624) target = $region80
        $region79: #{generator_forward.1} parent=71 // pred_region
          %v627 = vld [vmem:[%s0] sm:$0xff]
          %v628 = vld [vmem:[%s0 + $0x8] sm:$0xff]
          %vm629 = vcmask 523264
          %630 = vst.msk [vmem:[%s13] sm:$0xff] %vm629, %v627
          %631 = vst.msk [vmem:[%s13 + $0x8] sm:$0xff] %vm629, %v628
        $region80: #{generator_forward.1} parent=71 // pred_fallthru
          _
        %v632 = vld [vmem:[%s13] sm:$0xff]
        %v633 = vld [vmem:[%s13 + $0x8] sm:$0xff]
        %v634 = vld [vmem:[%s587] sm:$0xff]
        %v635 = vld [vmem:[%s587 + $0x8] sm:$0xff]
        %v636 = vld [vmem:[%s587 + $0x10] sm:$0xff]
        %v637 = vld [vmem:[%s587 + $0x18] sm:$0xff]
        %v638 = vld [vmem:[%s587 + $0x20] sm:$0xff]
        %v639 = vld [vmem:[%s587 + $0x28] sm:$0xff]
        %v640 = vld [vmem:[%s587 + $0x30] sm:$0xff]
        %v641 = vld [vmem:[%s587 + $0x38] sm:$0xff]
        %v642 = vld [vmem:[%s587 + $0x40] sm:$0xff]
        %v643 = vld [vmem:[%s587 + $0x48] sm:$0xff]
        %v644 = vld [vmem:[%s587 + $0x50] sm:$0xff]
        %v645 = vld [vmem:[%s587 + $0x58] sm:$0xff]
        %v646 = vld [vmem:[%s587 + $0x60] sm:$0xff]
        %v647 = vld [vmem:[%s587 + $0x68] sm:$0xff]
        %v648 = vld [vmem:[%s587 + $0x70] sm:$0xff]
        %v649 = vld [vmem:[%s587 + $0x78] sm:$0xff]
        %v650 = vld [vmem:[%s591] sm:$0x3]
        %v652 = vperm.slane %v650, 0
        %v653 = vperm.slane %v650, 1
        %vm656 = vcmask 523264
        %v658 = vsel %vm656, %v632, 0
        %v661 = vsel %vm656, %v633, 0
        %663 = vmatpush.msra.mxu0 0.0
        %664 = vmatpush.msra.mxu0 0.0
        %665 = vmatpush.msra.mxu0 0.0
        %666 = vmatpush.msra.mxu0 0.0
        %667 = vmatpush.msra.mxu0 0.0
        %668 = vmatpush.msra.mxu0 0.0
        %669 = vmatpush.msra.mxu0 0.0
        %670 = vmatpush.msra.mxu0 0.0
        %671 = vmatpush.msra.mxu0 %v648
        %672 = vmatpush.msra.mxu0 %v646
        %673 = vmatpush.msra.mxu0 %v644
        %674 = vmatpush.msra.mxu0 %v642
        %675 = vmatpush.msra.mxu0 %v640
        %676 = vmatpush.msra.mxu0 %v638
        %677 = vmatpush.msra.mxu0 %v636
        %678 = vmatpush.msra.mxu0 %v634
        %679 = vmatmul.f32.gmra.mxu0 %v658
        %v680 = vpop.f32.mrf.mxu0
        %v681 = vadd.f32 %v652, %v680
        %682 = vmatmul.f32.gmra.mxu0 %v661
        %v683 = vpop.f32.mrf.mxu0
        %v684 = vadd.f32 %v652, %v683
        %685 = vdwg.mxu0
        %686 = vmatpush.msra.mxu0 0.0
        %687 = vmatpush.msra.mxu0 0.0
        %688 = vmatpush.msra.mxu0 0.0
        %689 = vmatpush.msra.mxu0 0.0
        %690 = vmatpush.msra.mxu0 0.0
        %691 = vmatpush.msra.mxu0 0.0
        %692 = vmatpush.msra.mxu0 0.0
        %693 = vmatpush.msra.mxu0 0.0
        %694 = vmatpush.msra.mxu0 %v649
        %695 = vmatpush.msra.mxu0 %v647
        %696 = vmatpush.msra.mxu0 %v645
        %697 = vmatpush.msra.mxu0 %v643
        %698 = vmatpush.msra.mxu0 %v641
        %699 = vmatpush.msra.mxu0 %v639
        %700 = vmatpush.msra.mxu0 %v637
        %701 = vmatpush.msra.mxu0 %v635
        %702 = vmatmul.f32.gmra.mxu0 %v658
        %v703 = vpop.f32.mrf.mxu0
        %v704 = vadd.f32 %v653, %v703
        %705 = vmatmul.f32.gmra.mxu0 %v661
        %v706 = vpop.f32.mrf.mxu0
        %v707 = vadd.f32 %v653, %v706
        %708 = vdwg.mxu0
        %710 = vrot.lane.b32.xlu0 %v681, 64
        %v711 = vpop.permute.xlu0 %710
        %vm712 = vcmask 130048
        %v713 = vsel %vm712, %v681, 0
        %v715 = vsel %vm712, %v711, 0
        %717 = vmatpush.xpose.msra.mxu0 0.0
        %718 = vmatpush.xpose.msra.mxu0 0.0
        %719 = vmatpush.xpose.msra.mxu0 0.0
        %720 = vmatpush.xpose.msra.mxu0 0.0
        %721 = vmatpush.xpose.msra.mxu0 0.0
        %722 = vmatpush.xpose.msra.mxu0 0.0
        %723 = vmatpush.xpose.msra.mxu0 0.0
        %724 = vmatpush.xpose.msra.mxu0 0.0
        %725 = vmatpush.xpose.msra.mxu0 0.0
        %726 = vmatpush.xpose.msra.mxu0 0.0
        %727 = vmatpush.xpose.msra.mxu0 0.0
        %728 = vmatpush.xpose.msra.mxu0 0.0
        %729 = vmatpush.xpose.msra.mxu0 0.0
        %730 = vmatpush.xpose.msra.mxu0 0.0
        %731 = vmatpush.xpose.msra.mxu0 0.0
        %732 = vmatpush.xpose.msra.mxu0 %v715
        %733 = vmatmul.f32.gmra.mxu0 %v713
        %v734 = vpop.f32.mrf.mxu0
        %v735 = vadd.f32 0.0, %v734
        %736 = vdwg.mxu0
        %v737 = vmul.f32 %v735, 0.25
        %vm738 = vcmask 64512
        %v739 = vsel %vm738, %v737, -inf
        %740 = vmax.xlane.f32.xlu0 %v739
        %v741 = vpop.xlane.xlu0 %740
        %v742 = vsub.f32 %v737, %v741
        %v743 = vmul.f32 %v742, 1.442695
        %v744 = vpow.pop %v743
        %v745 = vsel %vm738, %v744, 0.0
        %746 = vadd.xlane.f32.xlu0 %v745
        %v747 = vpop.xlane.xlu0 %746
        %v748 = vrcp.pop %v747
        %v749 = vmul.f32 %v747, %v748
        %v750 = vsub.f32 1.0, %v749
        %v751 = vmul.f32 %v748, %v750
        %v752 = vadd.f32 %v748, %v751
        %vm753 = vweird.f32 %v747
        %vm754 = vweird.f32 %v748
        %vm755 = vmor %vm753, %vm754
        %v756 = vsel %vm755, %v748, %v752
        %v757 = vand.u32 2147483647, %v747
        %vm758 = vcmp.eq.f32.partialorder %v757, 8.507059e+37
        %v759 = vand.u32 %v747, 2147483648
        %v760 = vor.u32 1.1754944e-38, %v759
        %v761 = vsel %vm758, %v760, %v756
        %v762 = vmul.f32 %v744, %v761
        %v764 = vsel %vm738, %v762, 0
        %766 = vmatpush.msra.mxu0 0.0
        %767 = vmatpush.msra.mxu0 0.0
        %768 = vmatpush.msra.mxu0 0.0
        %769 = vmatpush.msra.mxu0 0.0
        %770 = vmatpush.msra.mxu0 0.0
        %771 = vmatpush.msra.mxu0 0.0
        %772 = vmatpush.msra.mxu0 0.0
        %773 = vmatpush.msra.mxu0 0.0
        %774 = vmatpush.msra.mxu0 0.0
        %775 = vmatpush.msra.mxu0 0.0
        %776 = vmatpush.msra.mxu0 0.0
        %777 = vmatpush.msra.mxu0 0.0
        %778 = vmatpush.msra.mxu0 0.0
        %779 = vmatpush.msra.mxu0 0.0
        %780 = vmatpush.msra.mxu0 0.0
        %781 = vmatpush.msra.mxu0 %v704
        %782 = vmatmul.f32.gmra.mxu0 %v764
        %v783 = vpop.f32.mrf.mxu0
        %v784 = vadd.f32 0.0, %v783
        %785 = vdwg.mxu0
        %786 = vst.msk [vmem:[#allocation2] sm:$0xff] %vm712, %v784
        %787 = vrot.lane.b32.xlu0 %v681, 112
        %v788 = vpop.permute.xlu0 %787
        %789 = vrot.lane.b32.xlu0 %v681, 48
        %v790 = vpop.permute.xlu0 %789
        %v791 = vsel %vm712, %v788, 0
        %v793 = vsel %vm712, %v790, 0
        %795 = vmatpush.xpose.msra.mxu0 0.0
        %796 = vmatpush.xpose.msra.mxu0 0.0
        %797 = vmatpush.xpose.msra.mxu0 0.0
        %798 = vmatpush.xpose.msra.mxu0 0.0
        %799 = vmatpush.xpose.msra.mxu0 0.0
        %800 = vmatpush.xpose.msra.mxu0 0.0
        %801 = vmatpush.xpose.msra.mxu0 0.0
        %802 = vmatpush.xpose.msra.mxu0 0.0
        %803 = vmatpush.xpose.msra.mxu0 0.0
        %804 = vmatpush.xpose.msra.mxu0 0.0
        %805 = vmatpush.xpose.msra.mxu0 0.0
        %806 = vmatpush.xpose.msra.mxu0 0.0
        %807 = vmatpush.xpose.msra.mxu0 0.0
        %808 = vmatpush.xpose.msra.mxu0 0.0
        %809 = vmatpush.xpose.msra.mxu0 0.0
        %810 = vmatpush.xpose.msra.mxu0 %v793
        %811 = vmatmul.f32.gmra.mxu0 %v791
        %v812 = vpop.f32.mrf.mxu0
        %v813 = vadd.f32 0.0, %v812
        %814 = vdwg.mxu0
        %v815 = vmul.f32 %v813, 0.25
        %v816 = vsel %vm738, %v815, -inf
        %817 = vmax.xlane.f32.xlu0 %v816
        %v818 = vpop.xlane.xlu0 %817
        %v819 = vsub.f32 %v815, %v818
        %v820 = vmul.f32 %v819, 1.442695
        %v821 = vpow.pop %v820
        %v822 = vsel %vm738, %v821, 0.0
        %823 = vadd.xlane.f32.xlu0 %v822
        %v824 = vpop.xlane.xlu0 %823
        %v825 = vrcp.pop %v824
        %v826 = vmul.f32 %v824, %v825
        %v827 = vsub.f32 1.0, %v826
        %v828 = vmul.f32 %v825, %v827
        %v829 = vadd.f32 %v825, %v828
        %vm830 = vweird.f32 %v824
        %vm831 = vweird.f32 %v825
        %vm832 = vmor %vm830, %vm831
        %v833 = vsel %vm832, %v825, %v829
        %v834 = vand.u32 2147483647, %v824
        %vm835 = vcmp.eq.f32.partialorder %v834, 8.507059e+37
        %v836 = vand.u32 %v824, 2147483648
        %v837 = vor.u32 1.1754944e-38, %v836
        %v838 = vsel %vm835, %v837, %v833
        %v839 = vmul.f32 %v821, %v838
        %841 = vrot.lane.b32.xlu0 %v704, 112
        %v842 = vpop.permute.xlu0 %841
        %v845 = vsel %vm738, %v839, 0
        %847 = vmatpush.msra.mxu0 0.0
        %848 = vmatpush.msra.mxu0 0.0
        %849 = vmatpush.msra.mxu0 0.0
        %850 = vmatpush.msra.mxu0 0.0
        %851 = vmatpush.msra.mxu0 0.0
        %852 = vmatpush.msra.mxu0 0.0
        %853 = vmatpush.msra.mxu0 0.0
        %854 = vmatpush.msra.mxu0 0.0
        %855 = vmatpush.msra.mxu0 0.0
        %856 = vmatpush.msra.mxu0 0.0
        %857 = vmatpush.msra.mxu0 0.0
        %858 = vmatpush.msra.mxu0 0.0
        %859 = vmatpush.msra.mxu0 0.0
        %860 = vmatpush.msra.mxu0 0.0
        %861 = vmatpush.msra.mxu0 0.0
        %862 = vmatpush.msra.mxu0 %v842
        %863 = vmatmul.f32.gmra.mxu0 %v845
        %v864 = vpop.f32.mrf.mxu0
        %v865 = vadd.f32 0.0, %v864
        %866 = vdwg.mxu0
        %868 = vrot.lane.b32.xlu0 %v865, 16
        %v869 = vpop.permute.xlu0 %868
        %vm871 = vcmask 261248
        %872 = vst.msk [vmem:[#allocation2] sm:$0xff] %vm871, %v869
        %873 = vrot.lane.b32.xlu0 %v681, 96
        %v874 = vpop.permute.xlu0 %873
        %875 = vrot.lane.b32.xlu0 %v681, 32
        %v876 = vpop.permute.xlu0 %875
        %v877 = vsel %vm712, %v874, 0
        %v879 = vsel %vm712, %v876, 0
        %881 = vmatpush.xpose.msra.mxu0 0.0
        %882 = vmatpush.xpose.msra.mxu0 0.0
        %883 = vmatpush.xpose.msra.mxu0 0.0
        %884 = vmatpush.xpose.msra.mxu0 0.0
        %885 = vmatpush.xpose.msra.mxu0 0.0
        %886 = vmatpush.xpose.msra.mxu0 0.0
        %887 = vmatpush.xpose.msra.mxu0 0.0
        %888 = vmatpush.xpose.msra.mxu0 0.0
        %889 = vmatpush.xpose.msra.mxu0 0.0
        %890 = vmatpush.xpose.msra.mxu0 0.0
        %891 = vmatpush.xpose.msra.mxu0 0.0
        %892 = vmatpush.xpose.msra.mxu0 0.0
        %893 = vmatpush.xpose.msra.mxu0 0.0
        %894 = vmatpush.xpose.msra.mxu0 0.0
        %895 = vmatpush.xpose.msra.mxu0 0.0
        %896 = vmatpush.xpose.msra.mxu0 %v879
        %897 = vmatmul.f32.gmra.mxu0 %v877
        %v898 = vpop.f32.mrf.mxu0
        %v899 = vadd.f32 0.0, %v898
        %900 = vdwg.mxu0
        %v901 = vmul.f32 %v899, 0.25
        %v902 = vsel %vm738, %v901, -inf
        %903 = vmax.xlane.f32.xlu0 %v902
        %v904 = vpop.xlane.xlu0 %903
        %v905 = vsub.f32 %v901, %v904
        %v906 = vmul.f32 %v905, 1.442695
        %v907 = vpow.pop %v906
        %v908 = vsel %vm738, %v907, 0.0
        %909 = vadd.xlane.f32.xlu0 %v908
        %v910 = vpop.xlane.xlu0 %909
        %v911 = vrcp.pop %v910
        %v912 = vmul.f32 %v910, %v911
        %v913 = vsub.f32 1.0, %v912
        %v914 = vmul.f32 %v911, %v913
        %v915 = vadd.f32 %v911, %v914
        %vm916 = vweird.f32 %v910
        %vm917 = vweird.f32 %v911
        %vm918 = vmor %vm916, %vm917
        %v919 = vsel %vm918, %v911, %v915
        %v920 = vand.u32 2147483647, %v910
        %vm921 = vcmp.eq.f32.partialorder %v920, 8.507059e+37
        %v922 = vand.u32 %v910, 2147483648
        %v923 = vor.u32 1.1754944e-38, %v922
        %v924 = vsel %vm921, %v923, %v919
        %v925 = vmul.f32 %v907, %v924
        %926 = vrot.lane.b32.xlu0 %v704, 96
        %v927 = vpop.permute.xlu0 %926
        %v930 = vsel %vm738, %v925, 0
        %932 = vmatpush.msra.mxu0 0.0
        %933 = vmatpush.msra.mxu0 0.0
        %934 = vmatpush.msra.mxu0 0.0
        %935 = vmatpush.msra.mxu0 0.0
        %936 = vmatpush.msra.mxu0 0.0
        %937 = vmatpush.msra.mxu0 0.0
        %938 = vmatpush.msra.mxu0 0.0
        %939 = vmatpush.msra.mxu0 0.0
        %940 = vmatpush.msra.mxu0 0.0
        %941 = vmatpush.msra.mxu0 0.0
        %942 = vmatpush.msra.mxu0 0.0
        %943 = vmatpush.msra.mxu0 0.0
        %944 = vmatpush.msra.mxu0 0.0
        %945 = vmatpush.msra.mxu0 0.0
        %946 = vmatpush.msra.mxu0 0.0
        %947 = vmatpush.msra.mxu0 %v927
        %948 = vmatmul.f32.gmra.mxu0 %v930
        %v949 = vpop.f32.mrf.mxu0
        %v950 = vadd.f32 0.0, %v949
        %951 = vdwg.mxu0
        %953 = vrot.lane.b32.xlu0 %v950, 32
        %v954 = vpop.permute.xlu0 %953
        %vm956 = vcmask 392448
        %957 = vst.msk [vmem:[#allocation2] sm:$0xff] %vm956, %v954
        %958 = vrot.lane.b32.xlu0 %v681, 80
        %v959 = vpop.permute.xlu0 %958
        %960 = vrot.lane.b32.xlu0 %v681, 16
        %v961 = vpop.permute.xlu0 %960
        %v962 = vsel %vm712, %v959, 0
        %v964 = vsel %vm712, %v961, 0
        %966 = vmatpush.xpose.msra.mxu0 0.0
        %967 = vmatpush.xpose.msra.mxu0 0.0
        %968 = vmatpush.xpose.msra.mxu0 0.0
        %969 = vmatpush.xpose.msra.mxu0 0.0
        %970 = vmatpush.xpose.msra.mxu0 0.0
        %971 = vmatpush.xpose.msra.mxu0 0.0
        %972 = vmatpush.xpose.msra.mxu0 0.0
        %973 = vmatpush.xpose.msra.mxu0 0.0
        %974 = vmatpush.xpose.msra.mxu0 0.0
        %975 = vmatpush.xpose.msra.mxu0 0.0
        %976 = vmatpush.xpose.msra.mxu0 0.0
        %977 = vmatpush.xpose.msra.mxu0 0.0
        %978 = vmatpush.xpose.msra.mxu0 0.0
        %979 = vmatpush.xpose.msra.mxu0 0.0
        %980 = vmatpush.xpose.msra.mxu0 0.0
        %981 = vmatpush.xpose.msra.mxu0 %v964
        %982 = vmatmul.f32.gmra.mxu0 %v962
        %v983 = vpop.f32.mrf.mxu0
        %v984 = vadd.f32 0.0, %v983
        %985 = vdwg.mxu0
        %v986 = vmul.f32 %v984, 0.25
        %v987 = vsel %vm738, %v986, -inf
        %988 = vmax.xlane.f32.xlu0 %v987
        %v989 = vpop.xlane.xlu0 %988
        %v990 = vsub.f32 %v986, %v989
        %v991 = vmul.f32 %v990, 1.442695
        %v992 = vpow.pop %v991
        %v993 = vsel %vm738, %v992, 0.0
        %994 = vadd.xlane.f32.xlu0 %v993
        %v995 = vpop.xlane.xlu0 %994
        %v996 = vrcp.pop %v995
        %v997 = vmul.f32 %v995, %v996
        %v998 = vsub.f32 1.0, %v997
        %v999 = vmul.f32 %v996, %v998
        %v1000 = vadd.f32 %v996, %v999
        %vm1001 = vweird.f32 %v995
        %vm1002 = vweird.f32 %v996
        %vm1003 = vmor %vm1001, %vm1002
        %v1004 = vsel %vm1003, %v996, %v1000
        %v1005 = vand.u32 2147483647, %v995
        %vm1006 = vcmp.eq.f32.partialorder %v1005, 8.507059e+37
        %v1007 = vand.u32 %v995, 2147483648
        %v1008 = vor.u32 1.1754944e-38, %v1007
        %v1009 = vsel %vm1006, %v1008, %v1004
        %v1010 = vmul.f32 %v992, %v1009
        %1011 = vrot.lane.b32.xlu0 %v704, 80
        %v1012 = vpop.permute.xlu0 %1011
        %v1015 = vsel %vm738, %v1010, 0
        %1017 = vmatpush.msra.mxu0 0.0
        %1018 = vmatpush.msra.mxu0 0.0
        %1019 = vmatpush.msra.mxu0 0.0
        %1020 = vmatpush.msra.mxu0 0.0
        %1021 = vmatpush.msra.mxu0 0.0
        %1022 = vmatpush.msra.mxu0 0.0
        %1023 = vmatpush.msra.mxu0 0.0
        %1024 = vmatpush.msra.mxu0 0.0
        %1025 = vmatpush.msra.mxu0 0.0
        %1026 = vmatpush.msra.mxu0 0.0
        %1027 = vmatpush.msra.mxu0 0.0
        %1028 = vmatpush.msra.mxu0 0.0
        %1029 = vmatpush.msra.mxu0 0.0
        %1030 = vmatpush.msra.mxu0 0.0
        %1031 = vmatpush.msra.mxu0 0.0
        %1032 = vmatpush.msra.mxu0 %v1012
        %1033 = vmatmul.f32.gmra.mxu0 %v1015
        %v1034 = vpop.f32.mrf.mxu0
        %v1035 = vadd.f32 0.0, %v1034
        %1036 = vdwg.mxu0
        %1038 = vrot.lane.b32.xlu0 %v1035, 48
        %v1039 = vpop.permute.xlu0 %1038
        %vm1041 = vcmask 523648
        %1042 = vst.msk [vmem:[#allocation2] sm:$0xff] %vm1041, %v1039
        %1044 = vrot.lane.b32.xlu0 %v684, 64
        %v1045 = vpop.permute.xlu0 %1044
        %v1046 = vsel %vm712, %v684, 0
        %v1048 = vsel %vm712, %v1045, 0
        %1050 = vmatpush.xpose.msra.mxu0 0.0
        %1051 = vmatpush.xpose.msra.mxu0 0.0
        %1052 = vmatpush.xpose.msra.mxu0 0.0
        %1053 = vmatpush.xpose.msra.mxu0 0.0
        %1054 = vmatpush.xpose.msra.mxu0 0.0
        %1055 = vmatpush.xpose.msra.mxu0 0.0
        %1056 = vmatpush.xpose.msra.mxu0 0.0
        %1057 = vmatpush.xpose.msra.mxu0 0.0
        %1058 = vmatpush.xpose.msra.mxu0 0.0
        %1059 = vmatpush.xpose.msra.mxu0 0.0
        %1060 = vmatpush.xpose.msra.mxu0 0.0
        %1061 = vmatpush.xpose.msra.mxu0 0.0
        %1062 = vmatpush.xpose.msra.mxu0 0.0
        %1063 = vmatpush.xpose.msra.mxu0 0.0
        %1064 = vmatpush.xpose.msra.mxu0 0.0
        %1065 = vmatpush.xpose.msra.mxu0 %v1048
        %1066 = vmatmul.f32.gmra.mxu0 %v1046
        %v1067 = vpop.f32.mrf.mxu0
        %v1068 = vadd.f32 0.0, %v1067
        %1069 = vdwg.mxu0
        %v1070 = vmul.f32 %v1068, 0.25
        %v1071 = vsel %vm738, %v1070, -inf
        %1072 = vmax.xlane.f32.xlu0 %v1071
        %v1073 = vpop.xlane.xlu0 %1072
        %v1074 = vsub.f32 %v1070, %v1073
        %v1075 = vmul.f32 %v1074, 1.442695
        %v1076 = vpow.pop %v1075
        %v1077 = vsel %vm738, %v1076, 0.0
        %1078 = vadd.xlane.f32.xlu0 %v1077
        %v1079 = vpop.xlane.xlu0 %1078
        %v1080 = vrcp.pop %v1079
        %v1081 = vmul.f32 %v1079, %v1080
        %v1082 = vsub.f32 1.0, %v1081
        %v1083 = vmul.f32 %v1080, %v1082
        %v1084 = vadd.f32 %v1080, %v1083
        %vm1085 = vweird.f32 %v1079
        %vm1086 = vweird.f32 %v1080
        %vm1087 = vmor %vm1085, %vm1086
        %v1088 = vsel %vm1087, %v1080, %v1084
        %v1089 = vand.u32 2147483647, %v1079
        %vm1090 = vcmp.eq.f32.partialorder %v1089, 8.507059e+37
        %v1091 = vand.u32 %v1079, 2147483648
        %v1092 = vor.u32 1.1754944e-38, %v1091
        %v1093 = vsel %vm1090, %v1092, %v1088
        %v1094 = vmul.f32 %v1076, %v1093
        %v1096 = vsel %vm738, %v1094, 0
        %1098 = vmatpush.msra.mxu0 0.0
        %1099 = vmatpush.msra.mxu0 0.0
        %1100 = vmatpush.msra.mxu0 0.0
        %1101 = vmatpush.msra.mxu0 0.0
        %1102 = vmatpush.msra.mxu0 0.0
        %1103 = vmatpush.msra.mxu0 0.0
        %1104 = vmatpush.msra.mxu0 0.0
        %1105 = vmatpush.msra.mxu0 0.0
        %1106 = vmatpush.msra.mxu0 0.0
        %1107 = vmatpush.msra.mxu0 0.0
        %1108 = vmatpush.msra.mxu0 0.0
        %1109 = vmatpush.msra.mxu0 0.0
        %1110 = vmatpush.msra.mxu0 0.0
        %1111 = vmatpush.msra.mxu0 0.0
        %1112 = vmatpush.msra.mxu0 0.0
        %1113 = vmatpush.msra.mxu0 %v707
        %1114 = vmatmul.f32.gmra.mxu0 %v1096
        %v1115 = vpop.f32.mrf.mxu0
        %v1116 = vadd.f32 0.0, %v1115
        %1117 = vdwg.mxu0
        %1118 = vst.msk [vmem:[#allocation2 + $0x8] sm:$0xff] %vm712, %v1116
        %1119 = vrot.lane.b32.xlu0 %v684, 112
        %v1120 = vpop.permute.xlu0 %1119
        %1121 = vrot.lane.b32.xlu0 %v684, 48
        %v1122 = vpop.permute.xlu0 %1121
        %v1123 = vsel %vm712, %v1120, 0
        %v1125 = vsel %vm712, %v1122, 0
        %1127 = vmatpush.xpose.msra.mxu0 0.0
        %1128 = vmatpush.xpose.msra.mxu0 0.0
        %1129 = vmatpush.xpose.msra.mxu0 0.0
        %1130 = vmatpush.xpose.msra.mxu0 0.0
        %1131 = vmatpush.xpose.msra.mxu0 0.0
        %1132 = vmatpush.xpose.msra.mxu0 0.0
        %1133 = vmatpush.xpose.msra.mxu0 0.0
        %1134 = vmatpush.xpose.msra.mxu0 0.0
        %1135 = vmatpush.xpose.msra.mxu0 0.0
        %1136 = vmatpush.xpose.msra.mxu0 0.0
        %1137 = vmatpush.xpose.msra.mxu0 0.0
        %1138 = vmatpush.xpose.msra.mxu0 0.0
        %1139 = vmatpush.xpose.msra.mxu0 0.0
        %1140 = vmatpush.xpose.msra.mxu0 0.0
        %1141 = vmatpush.xpose.msra.mxu0 0.0
        %1142 = vmatpush.xpose.msra.mxu0 %v1125
        %1143 = vmatmul.f32.gmra.mxu0 %v1123
        %v1144 = vpop.f32.mrf.mxu0
        %v1145 = vadd.f32 0.0, %v1144
        %1146 = vdwg.mxu0
        %v1147 = vmul.f32 %v1145, 0.25
        %v1148 = vsel %vm738, %v1147, -inf
        %1149 = vmax.xlane.f32.xlu0 %v1148
        %v1150 = vpop.xlane.xlu0 %1149
        %v1151 = vsub.f32 %v1147, %v1150
        %v1152 = vmul.f32 %v1151, 1.442695
        %v1153 = vpow.pop %v1152
        %v1154 = vsel %vm738, %v1153, 0.0
        %1155 = vadd.xlane.f32.xlu0 %v1154
        %v1156 = vpop.xlane.xlu0 %1155
        %v1157 = vrcp.pop %v1156
        %v1158 = vmul.f32 %v1156, %v1157
        %v1159 = vsub.f32 1.0, %v1158
        %v1160 = vmul.f32 %v1157, %v1159
        %v1161 = vadd.f32 %v1157, %v1160
        %vm1162 = vweird.f32 %v1156
        %vm1163 = vweird.f32 %v1157
        %vm1164 = vmor %vm1162, %vm1163
        %v1165 = vsel %vm1164, %v1157, %v1161
        %v1166 = vand.u32 2147483647, %v1156
        %vm1167 = vcmp.eq.f32.partialorder %v1166, 8.507059e+37
        %v1168 = vand.u32 %v1156, 2147483648
        %v1169 = vor.u32 1.1754944e-38, %v1168
        %v1170 = vsel %vm1167, %v1169, %v1165
        %v1171 = vmul.f32 %v1153, %v1170
        %1173 = vrot.lane.b32.xlu0 %v707, 112
        %v1174 = vpop.permute.xlu0 %1173
        %v1177 = vsel %vm738, %v1171, 0
        %1179 = vmatpush.msra.mxu0 0.0
        %1180 = vmatpush.msra.mxu0 0.0
        %1181 = vmatpush.msra.mxu0 0.0
        %1182 = vmatpush.msra.mxu0 0.0
        %1183 = vmatpush.msra.mxu0 0.0
        %1184 = vmatpush.msra.mxu0 0.0
        %1185 = vmatpush.msra.mxu0 0.0
        %1186 = vmatpush.msra.mxu0 0.0
        %1187 = vmatpush.msra.mxu0 0.0
        %1188 = vmatpush.msra.mxu0 0.0
        %1189 = vmatpush.msra.mxu0 0.0
        %1190 = vmatpush.msra.mxu0 0.0
        %1191 = vmatpush.msra.mxu0 0.0
        %1192 = vmatpush.msra.mxu0 0.0
        %1193 = vmatpush.msra.mxu0 0.0
        %1194 = vmatpush.msra.mxu0 %v1174
        %1195 = vmatmul.f32.gmra.mxu0 %v1177
        %v1196 = vpop.f32.mrf.mxu0
        %v1197 = vadd.f32 0.0, %v1196
        %1198 = vdwg.mxu0
        %1200 = vrot.lane.b32.xlu0 %v1197, 16
        %v1201 = vpop.permute.xlu0 %1200
        %1203 = vst.msk [vmem:[#allocation2 + $0x8] sm:$0xff] %vm871, %v1201
        %1204 = vrot.lane.b32.xlu0 %v684, 96
        %v1205 = vpop.permute.xlu0 %1204
        %1206 = vrot.lane.b32.xlu0 %v684, 32
        %v1207 = vpop.permute.xlu0 %1206
        %v1208 = vsel %vm712, %v1205, 0
        %v1210 = vsel %vm712, %v1207, 0
        %1212 = vmatpush.xpose.msra.mxu0 0.0
        %1213 = vmatpush.xpose.msra.mxu0 0.0
        %1214 = vmatpush.xpose.msra.mxu0 0.0
        %1215 = vmatpush.xpose.msra.mxu0 0.0
        %1216 = vmatpush.xpose.msra.mxu0 0.0
        %1217 = vmatpush.xpose.msra.mxu0 0.0
        %1218 = vmatpush.xpose.msra.mxu0 0.0
        %1219 = vmatpush.xpose.msra.mxu0 0.0
        %1220 = vmatpush.xpose.msra.mxu0 0.0
        %1221 = vmatpush.xpose.msra.mxu0 0.0
        %1222 = vmatpush.xpose.msra.mxu0 0.0
        %1223 = vmatpush.xpose.msra.mxu0 0.0
        %1224 = vmatpush.xpose.msra.mxu0 0.0
        %1225 = vmatpush.xpose.msra.mxu0 0.0
        %1226 = vmatpush.xpose.msra.mxu0 0.0
        %1227 = vmatpush.xpose.msra.mxu0 %v1210
        %1228 = vmatmul.f32.gmra.mxu0 %v1208
        %v1229 = vpop.f32.mrf.mxu0
        %v1230 = vadd.f32 0.0, %v1229
        %1231 = vdwg.mxu0
        %v1232 = vmul.f32 %v1230, 0.25
        %v1233 = vsel %vm738, %v1232, -inf
        %1234 = vmax.xlane.f32.xlu0 %v1233
        %v1235 = vpop.xlane.xlu0 %1234
        %v1236 = vsub.f32 %v1232, %v1235
        %v1237 = vmul.f32 %v1236, 1.442695
        %v1238 = vpow.pop %v1237
        %v1239 = vsel %vm738, %v1238, 0.0
        %1240 = vadd.xlane.f32.xlu0 %v1239
        %v1241 = vpop.xlane.xlu0 %1240
        %v1242 = vrcp.pop %v1241
        %v1243 = vmul.f32 %v1241, %v1242
        %v1244 = vsub.f32 1.0, %v1243
        %v1245 = vmul.f32 %v1242, %v1244
        %v1246 = vadd.f32 %v1242, %v1245
        %vm1247 = vweird.f32 %v1241
        %vm1248 = vweird.f32 %v1242
        %vm1249 = vmor %vm1247, %vm1248
        %v1250 = vsel %vm1249, %v1242, %v1246
        %v1251 = vand.u32 2147483647, %v1241
        %vm1252 = vcmp.eq.f32.partialorder %v1251, 8.507059e+37
        %v1253 = vand.u32 %v1241, 2147483648
        %v1254 = vor.u32 1.1754944e-38, %v1253
        %v1255 = vsel %vm1252, %v1254, %v1250
        %v1256 = vmul.f32 %v1238, %v1255
        %1257 = vrot.lane.b32.xlu0 %v707, 96
        %v1258 = vpop.permute.xlu0 %1257
        %v1261 = vsel %vm738, %v1256, 0
        %1263 = vmatpush.msra.mxu0 0.0
        %1264 = vmatpush.msra.mxu0 0.0
        %1265 = vmatpush.msra.mxu0 0.0
        %1266 = vmatpush.msra.mxu0 0.0
        %1267 = vmatpush.msra.mxu0 0.0
        %1268 = vmatpush.msra.mxu0 0.0
        %1269 = vmatpush.msra.mxu0 0.0
        %1270 = vmatpush.msra.mxu0 0.0
        %1271 = vmatpush.msra.mxu0 0.0
        %1272 = vmatpush.msra.mxu0 0.0
        %1273 = vmatpush.msra.mxu0 0.0
        %1274 = vmatpush.msra.mxu0 0.0
        %1275 = vmatpush.msra.mxu0 0.0
        %1276 = vmatpush.msra.mxu0 0.0
        %1277 = vmatpush.msra.mxu0 0.0
        %1278 = vmatpush.msra.mxu0 %v1258
        %1279 = vmatmul.f32.gmra.mxu0 %v1261
        %v1280 = vpop.f32.mrf.mxu0
        %v1281 = vadd.f32 0.0, %v1280
        %1282 = vdwg.mxu0
        %1284 = vrot.lane.b32.xlu0 %v1281, 32
        %v1285 = vpop.permute.xlu0 %1284
        %1287 = vst.msk [vmem:[#allocation2 + $0x8] sm:$0xff] %vm956, %v1285
        %1288 = vrot.lane.b32.xlu0 %v684, 80
        %v1289 = vpop.permute.xlu0 %1288
        %1290 = vrot.lane.b32.xlu0 %v684, 16
        %v1291 = vpop.permute.xlu0 %1290
        %v1292 = vsel %vm712, %v1289, 0
        %v1294 = vsel %vm712, %v1291, 0
        %1296 = vmatpush.xpose.msra.mxu0 0.0
        %1297 = vmatpush.xpose.msra.mxu0 0.0
        %1298 = vmatpush.xpose.msra.mxu0 0.0
        %1299 = vmatpush.xpose.msra.mxu0 0.0
        %1300 = vmatpush.xpose.msra.mxu0 0.0
        %1301 = vmatpush.xpose.msra.mxu0 0.0
        %1302 = vmatpush.xpose.msra.mxu0 0.0
        %1303 = vmatpush.xpose.msra.mxu0 0.0
        %1304 = vmatpush.xpose.msra.mxu0 0.0
        %1305 = vmatpush.xpose.msra.mxu0 0.0
        %1306 = vmatpush.xpose.msra.mxu0 0.0
        %1307 = vmatpush.xpose.msra.mxu0 0.0
        %1308 = vmatpush.xpose.msra.mxu0 0.0
        %1309 = vmatpush.xpose.msra.mxu0 0.0
        %1310 = vmatpush.xpose.msra.mxu0 0.0
        %1311 = vmatpush.xpose.msra.mxu0 %v1294
        %1312 = vmatmul.f32.gmra.mxu0 %v1292
        %v1313 = vpop.f32.mrf.mxu0
        %v1314 = vadd.f32 0.0, %v1313
        %1315 = vdwg.mxu0
        %v1316 = vmul.f32 %v1314, 0.25
        %v1317 = vsel %vm738, %v1316, -inf
        %1318 = vmax.xlane.f32.xlu0 %v1317
        %v1319 = vpop.xlane.xlu0 %1318
        %v1320 = vsub.f32 %v1316, %v1319
        %v1321 = vmul.f32 %v1320, 1.442695
        %v1322 = vpow.pop %v1321
        %v1323 = vsel %vm738, %v1322, 0.0
        %1324 = vadd.xlane.f32.xlu0 %v1323
        %v1325 = vpop.xlane.xlu0 %1324
        %v1326 = vrcp.pop %v1325
        %v1327 = vmul.f32 %v1325, %v1326
        %v1328 = vsub.f32 1.0, %v1327
        %v1329 = vmul.f32 %v1326, %v1328
        %v1330 = vadd.f32 %v1326, %v1329
        %vm1331 = vweird.f32 %v1325
        %vm1332 = vweird.f32 %v1326
        %vm1333 = vmor %vm1331, %vm1332
        %v1334 = vsel %vm1333, %v1326, %v1330
        %v1335 = vand.u32 2147483647, %v1325
        %vm1336 = vcmp.eq.f32.partialorder %v1335, 8.507059e+37
        %v1337 = vand.u32 %v1325, 2147483648
        %v1338 = vor.u32 1.1754944e-38, %v1337
        %v1339 = vsel %vm1336, %v1338, %v1334
        %v1340 = vmul.f32 %v1322, %v1339
        %1341 = vrot.lane.b32.xlu0 %v707, 80
        %v1342 = vpop.permute.xlu0 %1341
        %v1345 = vsel %vm738, %v1340, 0
        %1347 = vmatpush.msra.mxu0 0.0
        %1348 = vmatpush.msra.mxu0 0.0
        %1349 = vmatpush.msra.mxu0 0.0
        %1350 = vmatpush.msra.mxu0 0.0
        %1351 = vmatpush.msra.mxu0 0.0
        %1352 = vmatpush.msra.mxu0 0.0
        %1353 = vmatpush.msra.mxu0 0.0
        %1354 = vmatpush.msra.mxu0 0.0
        %1355 = vmatpush.msra.mxu0 0.0
        %1356 = vmatpush.msra.mxu0 0.0
        %1357 = vmatpush.msra.mxu0 0.0
        %1358 = vmatpush.msra.mxu0 0.0
        %1359 = vmatpush.msra.mxu0 0.0
        %1360 = vmatpush.msra.mxu0 0.0
        %1361 = vmatpush.msra.mxu0 0.0
        %1362 = vmatpush.msra.mxu0 %v1342
        %1363 = vmatmul.f32.gmra.mxu0 %v1345
        %v1364 = vpop.f32.mrf.mxu0
        %v1365 = vadd.f32 0.0, %v1364
        %1366 = vdwg.mxu0
        %1368 = vrot.lane.b32.xlu0 %v1365, 48
        %v1369 = vpop.permute.xlu0 %1368
        %1371 = vst.msk [vmem:[#allocation2 + $0x8] sm:$0xff] %vm1041, %v1369
        %v1372 = vld [vmem:[#allocation2] sm:$0xff]
        %v1373 = vld [vmem:[#allocation2 + $0x8] sm:$0xff]
        %v1374 = vld [vmem:[%s596] sm:$0xff]
        %v1375 = vld [vmem:[%s596 + $0x8] sm:$0xff]
        %v1376 = vld [vmem:[%s596 + $0x10] sm:$0xff]
        %v1377 = vld [vmem:[%s596 + $0x18] sm:$0xff]
        %v1378 = vld [vmem:[%s596 + $0x20] sm:$0xff]
        %v1379 = vld [vmem:[%s596 + $0x28] sm:$0xff]
        %v1380 = vld [vmem:[%s596 + $0x30] sm:$0xff]
        %v1381 = vld [vmem:[%s596 + $0x38] sm:$0xff]
        %v1382 = vld [vmem:[%s599] sm:$0x1]
        %v1384 = vperm.slane %v1382, 0
        %v1387 = vsel %vm656, %v1372, 0
        %v1390 = vsel %vm656, %v1373, 0
        %1392 = vmatpush.msra.mxu0 0.0
        %1393 = vmatpush.msra.mxu0 0.0
        %1394 = vmatpush.msra.mxu0 0.0
        %1395 = vmatpush.msra.mxu0 0.0
        %1396 = vmatpush.msra.mxu0 0.0
        %1397 = vmatpush.msra.mxu0 0.0
        %1398 = vmatpush.msra.mxu0 0.0
        %1399 = vmatpush.msra.mxu0 0.0
        %1400 = vmatpush.msra.mxu0 %v1381
        %1401 = vmatpush.msra.mxu0 %v1380
        %1402 = vmatpush.msra.mxu0 %v1379
        %1403 = vmatpush.msra.mxu0 %v1378
        %1404 = vmatpush.msra.mxu0 %v1377
        %1405 = vmatpush.msra.mxu0 %v1376
        %1406 = vmatpush.msra.mxu0 %v1375
        %1407 = vmatpush.msra.mxu0 %v1374
        %1408 = vmatmul.f32.gmra.mxu0 %v1387
        %v1409 = vpop.f32.mrf.mxu0
        %v1410 = vadd.f32 %v1384, %v1409
        %1411 = vmatmul.f32.gmra.mxu0 %v1390
        %v1412 = vpop.f32.mrf.mxu0
        %v1413 = vadd.f32 %v1384, %v1412
        %1414 = vdwg.mxu0
        %v1415 = vadd.f32 %v632, %v1410
        %v1416 = vadd.f32 %v633, %v1413
        %v1417 = vld [vmem:[%s613] sm:$0x1]
        %v1418 = vld [vmem:[%s616] sm:$0x1]
        %v1419 = vsel %vm656, %v1415, 0.0
        %1420 = vadd.xlane.f32.xlu0 %v1419
        %v1421 = vpop.xlane.xlu0 %1420
        %v1422 = vsel %vm656, %v1416, 0.0
        %1423 = vadd.xlane.f32.xlu0 %v1422
        %v1424 = vpop.xlane.xlu0 %1423
        %v1425 = vrcp.pop 64.0
        %v1426 = vmul.f32 64.0, %v1425
        %v1427 = vsub.f32 1.0, %v1426
        %v1428 = vmul.f32 %v1425, %v1427
        %v1429 = vadd.f32 %v1425, %v1428
        %vm1430 = vweird.f32 %v1425
        %v1431 = vsel %vm1430, %v1425, %v1429
        %v1432 = vmul.f32 %v1421, %v1431
        %v1433 = vmul.f32 %v1424, %v1431
        %v1434 = vsub.f32 %v1415, %v1432
        %v1435 = vsub.f32 %v1416, %v1433
        %v1436 = vmul.f32 %v1434, %v1434
        %v1437 = vmul.f32 %v1435, %v1435
        %v1438 = vsel %vm656, %v1436, 0.0
        %1439 = vadd.xlane.f32.xlu0 %v1438
        %v1440 = vpop.xlane.xlu0 %1439
        %v1441 = vsel %vm656, %v1437, 0.0
        %1442 = vadd.xlane.f32.xlu0 %v1441
        %v1443 = vpop.xlane.xlu0 %1442
        %v1444 = vmul.f32 %v1440, %v1431
        %v1445 = vmul.f32 %v1443, %v1431
        %v1446 = vadd.f32 %v1444, 1e-05
        %v1447 = vadd.f32 %v1445, 1e-05
        %v1448 = vrsqrt.pop %v1446
        %v1449 = vmul.f32 %v1448, %v1446
        %v1450 = vmul.f32 %v1449, %v1448
        %v1451 = vmul.f32 0.5, %v1450
        %v1452 = vsub.f32 1.5, %v1451
        %v1453 = vmul.f32 %v1448, %v1452
        %vm1454 = vweird.f32 %v1446
        %vm1455 = vweird.f32 %v1448
        %vm1456 = vmor %vm1454, %vm1455
        %v1457 = vsel %vm1456, %v1448, %v1453
        %v1458 = vrsqrt.pop %v1447
        %v1459 = vmul.f32 %v1458, %v1447
        %v1460 = vmul.f32 %v1459, %v1458
        %v1461 = vmul.f32 0.5, %v1460
        %v1462 = vsub.f32 1.5, %v1461
        %v1463 = vmul.f32 %v1458, %v1462
        %vm1464 = vweird.f32 %v1447
        %vm1465 = vweird.f32 %v1458
        %vm1466 = vmor %vm1464, %vm1465
        %v1467 = vsel %vm1466, %v1458, %v1463
        %v1468 = vmul.f32 %v1434, %v1457
        %v1469 = vmul.f32 %v1435, %v1467
        %v1471 = vperm.slane %v1417, 0
        %v1473 = vmul.f32 %v1468, %v1471
        %v1474 = vmul.f32 %v1469, %v1471
        %v1476 = vperm.slane %v1418, 0
        %v1478 = vadd.f32 %v1473, %v1476
        %v1479 = vadd.f32 %v1474, %v1476
        %v1480 = vld [vmem:[%s504] sm:$0xff]
        %v1481 = vld [vmem:[%s504 + $0x8] sm:$0xff]
        %v1482 = vld [vmem:[%s504 + $0x10] sm:$0xff]
        %v1483 = vld [vmem:[%s504 + $0x18] sm:$0xff]
        %v1484 = vld [vmem:[%s504 + $0x20] sm:$0xff]
        %v1485 = vld [vmem:[%s504 + $0x28] sm:$0xff]
        %v1486 = vld [vmem:[%s504 + $0x30] sm:$0xff]
        %v1487 = vld [vmem:[%s504 + $0x38] sm:$0xff]
        %v1488 = vld [vmem:[%s602] sm:$0x1]
        %v1490 = vperm.slane %v1488, 0
        %v1493 = vsel %vm656, %v1478, 0
        %v1496 = vsel %vm656, %v1479, 0
        %1498 = vmatpush.msra.mxu0 0.0
        %1499 = vmatpush.msra.mxu0 0.0
        %1500 = vmatpush.msra.mxu0 0.0
        %1501 = vmatpush.msra.mxu0 0.0
        %1502 = vmatpush.msra.mxu0 0.0
        %1503 = vmatpush.msra.mxu0 0.0
        %1504 = vmatpush.msra.mxu0 0.0
        %1505 = vmatpush.msra.mxu0 0.0
        %1506 = vmatpush.msra.mxu0 %v1487
        %1507 = vmatpush.msra.mxu0 %v1486
        %1508 = vmatpush.msra.mxu0 %v1485
        %1509 = vmatpush.msra.mxu0 %v1484
        %1510 = vmatpush.msra.mxu0 %v1483
        %1511 = vmatpush.msra.mxu0 %v1482
        %1512 = vmatpush.msra.mxu0 %v1481
        %1513 = vmatpush.msra.mxu0 %v1480
        %1514 = vmatmul.f32.gmra.mxu0 %v1493
        %v1515 = vpop.f32.mrf.mxu0
        %v1516 = vadd.f32 %v1490, %v1515
        %1517 = vmatmul.f32.gmra.mxu0 %v1496
        %v1518 = vpop.f32.mrf.mxu0
        %v1519 = vadd.f32 %v1490, %v1518
        %1520 = vdwg.mxu0
        %v1521 = vmax.f32 %v1516, 0.0
        %v1522 = vmax.f32 %v1519, 0.0
        %v1523 = vld [vmem:[%s607] sm:$0xff]
        %v1524 = vld [vmem:[%s607 + $0x8] sm:$0xff]
        %v1525 = vld [vmem:[%s607 + $0x10] sm:$0xff]
        %v1526 = vld [vmem:[%s607 + $0x18] sm:$0xff]
        %v1527 = vld [vmem:[%s607 + $0x20] sm:$0xff]
        %v1528 = vld [vmem:[%s607 + $0x28] sm:$0xff]
        %v1529 = vld [vmem:[%s607 + $0x30] sm:$0xff]
        %v1530 = vld [vmem:[%s607 + $0x38] sm:$0xff]
        %v1531 = vld [vmem:[%s607 + $0x40] sm:$0xff]
        %v1532 = vld [vmem:[%s607 + $0x48] sm:$0xff]
        %v1533 = vld [vmem:[%s607 + $0x50] sm:$0xff]
        %v1534 = vld [vmem:[%s607 + $0x58] sm:$0xff]
        %v1535 = vld [vmem:[%s607 + $0x60] sm:$0xff]
        %v1536 = vld [vmem:[%s607 + $0x68] sm:$0xff]
        %v1537 = vld [vmem:[%s607 + $0x70] sm:$0xff]
        %v1538 = vld [vmem:[%s607 + $0x78] sm:$0xff]
        %v1539 = vld [vmem:[%s610] sm:$0x1]
        %v1541 = vperm.slane %v1539, 0
        %1543 = vmatpush.msra.mxu0 %v1538
        %1544 = vmatpush.msra.mxu0 %v1537
        %1545 = vmatpush.msra.mxu0 %v1536
        %1546 = vmatpush.msra.mxu0 %v1535
        %1547 = vmatpush.msra.mxu0 %v1534
        %1548 = vmatpush.msra.mxu0 %v1533
        %1549 = vmatpush.msra.mxu0 %v1532
        %1550 = vmatpush.msra.mxu0 %v1531
        %1551 = vmatpush.msra.mxu0 %v1530
        %1552 = vmatpush.msra.mxu0 %v1529
        %1553 = vmatpush.msra.mxu0 %v1528
        %1554 = vmatpush.msra.mxu0 %v1527
        %1555 = vmatpush.msra.mxu0 %v1526
        %1556 = vmatpush.msra.mxu0 %v1525
        %1557 = vmatpush.msra.mxu0 %v1524
        %1558 = vmatpush.msra.mxu0 %v1523
        %1559 = vmatmul.f32.gmra.mxu0 %v1521
        %v1560 = vpop.f32.mrf.mxu0
        %v1561 = vadd.f32 %v1541, %v1560
        %1562 = vmatmul.f32.gmra.mxu0 %v1522
        %v1563 = vpop.f32.mrf.mxu0
        %v1564 = vadd.f32 %v1541, %v1563
        %1565 = vdwg.mxu0
        %v1566 = vadd.f32 %v1478, %v1561
        %v1567 = vadd.f32 %v1479, %v1564
        %v1568 = vld [vmem:[%s619] sm:$0x1]
        %v1569 = vld [vmem:[%s622] sm:$0x1]
        %v1570 = vsel %vm656, %v1566, 0.0
        %1571 = vadd.xlane.f32.xlu0 %v1570
        %v1572 = vpop.xlane.xlu0 %1571
        %v1573 = vsel %vm656, %v1567, 0.0
        %1574 = vadd.xlane.f32.xlu0 %v1573
        %v1575 = vpop.xlane.xlu0 %1574
        %v1576 = vmul.f32 %v1572, %v1431
        %v1577 = vmul.f32 %v1575, %v1431
        %v1578 = vsub.f32 %v1566, %v1576
        %v1579 = vsub.f32 %v1567, %v1577
        %v1580 = vmul.f32 %v1578, %v1578
        %v1581 = vmul.f32 %v1579, %v1579
        %v1582 = vsel %vm656, %v1580, 0.0
        %1583 = vadd.xlane.f32.xlu0 %v1582
        %v1584 = vpop.xlane.xlu0 %1583
        %v1585 = vsel %vm656, %v1581, 0.0
        %1586 = vadd.xlane.f32.xlu0 %v1585
        %v1587 = vpop.xlane.xlu0 %1586
        %v1588 = vmul.f32 %v1584, %v1431
        %v1589 = vmul.f32 %v1587, %v1431
        %v1590 = vadd.f32 %v1588, 1e-05
        %v1591 = vadd.f32 %v1589, 1e-05
        %v1592 = vrsqrt.pop %v1590
        %v1593 = vmul.f32 %v1592, %v1590
        %v1594 = vmul.f32 %v1593, %v1592
        %v1595 = vmul.f32 0.5, %v1594
        %v1596 = vsub.f32 1.5, %v1595
        %v1597 = vmul.f32 %v1592, %v1596
        %vm1598 = vweird.f32 %v1590
        %vm1599 = vweird.f32 %v1592
        %vm1600 = vmor %vm1598, %vm1599
        %v1601 = vsel %vm1600, %v1592, %v1597
        %v1602 = vrsqrt.pop %v1591
        %v1603 = vmul.f32 %v1602, %v1591
        %v1604 = vmul.f32 %v1603, %v1602
        %v1605 = vmul.f32 0.5, %v1604
        %v1606 = vsub.f32 1.5, %v1605
        %v1607 = vmul.f32 %v1602, %v1606
        %vm1608 = vweird.f32 %v1591
        %vm1609 = vweird.f32 %v1602
        %vm1610 = vmor %vm1608, %vm1609
        %v1611 = vsel %vm1610, %v1602, %v1607
        %v1612 = vmul.f32 %v1578, %v1601
        %v1613 = vmul.f32 %v1579, %v1611
        %v1615 = vperm.slane %v1568, 0
        %v1617 = vmul.f32 %v1612, %v1615
        %v1618 = vmul.f32 %v1613, %v1615
        %v1620 = vperm.slane %v1569, 0
        %v1622 = vadd.f32 %v1617, %v1620
        %v1623 = vadd.f32 %v1618, %v1620
        %1624 = vst.msk [vmem:[%s13] sm:$0xff] %vm656, %v1622
        %1625 = vst.msk [vmem:[%s13 + $0x8] sm:$0xff] %vm656, %v1623
        // Predicated region
        $region81: #{generator_forward.1} parent=71 // pred_check
          %p1626 = pneg %p373
        $region82: #{generator_forward.1} parent=71 // pred_check_branch
          %1628 = sbr.rel (%p1626) target = $region84
        $region83: #{generator_forward.1} parent=71 // pred_region
          _
        $region84: #{generator_forward.1} parent=71 // pred_fallthru
          _
        // Predicated region
        $region85: #{generator_forward.1} parent=71 // pred_check
          %p1629 = pneg %p373
        $region86: #{generator_forward.1} parent=71 // pred_check_branch
          %1631 = sbr.rel (%p1629) target = $region88
        $region87: #{generator_forward.1} parent=71 // pred_region
          _
        $region88: #{generator_forward.1} parent=71 // pred_fallthru
          _
      $region72: #{generator_forward.1} parent=5 // pred_fallthru
        _
      %p1632 = scmp.le.s32.totalorder 2, %s22
      // Predicated region
      $region89: #{generator_forward.1} parent=5 // pred_check
        %p1633 = pneg %p1632
      $region90: #{generator_forward.1} parent=5 // pred_check_branch
        %1635 = sbr.rel (%p1633) target = $region92
      $region91: #{generator_forward.1} parent=5 // pred_region
        %s1636 = ssub.s32 %s22, 2
      $region92: #{generator_forward.1} parent=5 // pred_fallthru
        _
    $region6: #{generator_forward.1} parent=1 // loop_footer
      %s26 = sadd.s32 1, %s22
    $region7: #{generator_forward.1} parent=1 // loop_footer_branch
      %21 = sbr.rel target = $region3
    $region8: #{generator_forward.1} parent=1 // loop_exit
      _
    %1637 = vsyncpa [#allocation4], 1
    %s1638 = scalar_lea.sflag [#allocation4], 1
    %1639 = vsyncpa %s1638, 1

</llo_original>
